<compile_context>
chip_gen: v6e
topology: v6e:2x2x1
jax: 0.10.0
libtpu: 0.0.40
codegen_flags: <defaults>
</compile_context>

<pallas_src>
import math
import functools

import jax
import jax.numpy as jnp
from jax.experimental import pallas as pl
from jax.experimental.pallas import tpu as pltpu


def _self_attention_kernel(xq_ref, xkv_ref, wqkv_ref, bqkv_ref, out_ref, *,
                           num_heads, head_size, head_batched):
    nh, d = num_heads, head_size
    hidden = nh * d

    # Cast activations to bf16 right before the MXU matmuls; accumulate in f32.
    # All softmax / normalization math stays in f32 (v5e has no bf16 VPU/EUP).
    xq = xq_ref[0].astype(jnp.bfloat16)      # (Tq, H)  query-row tile
    xkv = xkv_ref[0].astype(jnp.bfloat16)    # (S,  H)  full sequence for K/V
    w = wqkv_ref[...]                        # (H, 3H)  bf16, fused [Wq|Wk|Wv]
    b = bqkv_ref[...]                        # (1, 3H)  f32,  fused [bq|bk|bv]

    # Fused projections: Q from the query tile; K|V fused (N = 2H) from the
    # full sequence.  f32 accumulation on the MXU, bias added in f32.
    q = jnp.dot(xq, w[:, :hidden], preferred_element_type=jnp.float32) + b[:, :hidden]
    kv = jnp.dot(xkv, w[:, hidden:], preferred_element_type=jnp.float32) + b[:, hidden:]
    k = kv[:, :hidden]
    v = kv[:, hidden:]

    # Fold 1/sqrt(d) into Q (f32, fewer elements than scaling the scores).
    q = q * (1.0 / math.sqrt(d))

    tq = q.shape[0]
    s = k.shape[0]

    if head_batched:
        # Head-batched attention: (nh, Tq, d) x (nh, S, d) batched MXU dots.
        # Removes per-head lane slices, the explicit K^T and the concatenate.
        qh = jnp.transpose(q.reshape(tq, nh, d), (1, 0, 2)).astype(jnp.bfloat16)
        kh = jnp.transpose(k.reshape(s, nh, d), (1, 0, 2)).astype(jnp.bfloat16)
        vh = jnp.transpose(v.reshape(s, nh, d), (1, 0, 2)).astype(jnp.bfloat16)

        scores = jnp.einsum("hqd,hkd->hqk", qh, kh,
                            preferred_element_type=jnp.float32)      # (nh, Tq, S)
        m = jnp.max(scores, axis=-1, keepdims=True)
        p = jnp.exp(scores - m)
        p = p * pl.reciprocal(jnp.sum(p, axis=-1, keepdims=True), approx=True)
        # TODO(synk): attention_probs dropout is identity (eval-mode semantics).
        ctx = jnp.einsum("hqk,hkd->hqd", p.astype(jnp.bfloat16), vh,
                         preferred_element_type=jnp.float32)          # (nh, Tq, d)
        ctx = jnp.transpose(ctx, (1, 0, 2)).reshape(tq, hidden)        # (Tq, H)
    else:
        # Conservative fallback: per-head f32 attention (portability path).
        parts = []
        for h in range(nh):
            lo = h * d
            qh = q[:, lo:lo + d]
            kh = k[:, lo:lo + d]
            vh = v[:, lo:lo + d]
            sc = jnp.dot(qh, kh.T, preferred_element_type=jnp.float32)
            m = jnp.max(sc, axis=-1, keepdims=True)
            p = jnp.exp(sc - m)
            p = p * pl.reciprocal(jnp.sum(p, axis=-1, keepdims=True), approx=True)
            parts.append(jnp.dot(p, vh, preferred_element_type=jnp.float32))
        ctx = jnp.concatenate(parts, axis=-1)

    out_ref[0] = ctx.astype(out_ref.dtype)


def _vmem_limit_bytes(S, H, tile_s, num_heads, x_itemsize):
    f32, bf16 = 4, 2
    weights = H * 3 * H * bf16 + 3 * H * f32                  # single-buffered params
    io = 2 * (tile_s * H + S * H + tile_s * H) * x_itemsize   # double-buffered in/out
    work = (3 * tile_s * H + 2 * S * H
            + 2 * num_heads * tile_s * S + 2 * tile_s * H) * f32
    est = int(1.5 * (weights + io + work)) + (8 << 20)
    # Keep within v7x's 64 MiB physical VMEM; never below the common default.
    return int(max(32 << 20, min(est, 64 << 20)))


def bert_self_attention_pallas(x, params, *, num_heads, tile_s=None,
                               head_batched=True, single_buffer_weights=True):
    B, S, H = x.shape
    assert H % num_heads == 0
    d = H // num_heads

    # Tile the query rows; K/V always see the full sequence.
    if tile_s is None:
        tile_s = S if S <= 256 else 256
    if S % tile_s != 0:
        tile_s = S
    n_q_tiles = S // tile_s

    # Fused QKV weight in bf16 (MXU-native on v6e/v7x, 2x f32 on v5e, half the
    # VMEM/HBM footprint); biases stay f32 (added after f32 accumulation).
    w_qkv = jnp.concatenate(
        [params["wq"], params["wk"], params["wv"]], axis=1).astype(jnp.bfloat16)
    b_qkv = jnp.concatenate(
        [params["bq"], params["bk"], params["bv"]], axis=1).astype(jnp.float32)

    def _const_spec(shape):
        idx = lambda b, i: (0,) * len(shape)
        if single_buffer_weights:
            # Constant index_map across the grid -> single-buffer the weights.
            return pl.BlockSpec(shape, idx, pipeline_mode=pl.Buffered(1))
        return pl.BlockSpec(shape, idx)

    in_specs = [
        pl.BlockSpec((1, tile_s, H), lambda b, i: (b, i, 0)),   # query-row tile
        pl.BlockSpec((1, S, H), lambda b, i: (b, 0, 0)),        # full seq for K/V
        _const_spec(w_qkv.shape),
        _const_spec(b_qkv.shape),
    ]
    out_specs = pl.BlockSpec((1, tile_s, H), lambda b, i: (b, i, 0))

    kernel = functools.partial(_self_attention_kernel, num_heads=num_heads,
                               head_size=d, head_batched=head_batched)

    return pl.pallas_call(
        kernel,
        out_shape=jax.ShapeDtypeStruct((B, S, H), x.dtype),
        grid_spec=pltpu.PrefetchScalarGridSpec(
            num_scalar_prefetch=0,
            grid=(B, n_q_tiles),
            in_specs=in_specs,
            out_specs=out_specs,
        ),
        compiler_params=pltpu.CompilerParams(
            dimension_semantics=("parallel", "parallel"),
            vmem_limit_bytes=_vmem_limit_bytes(S, H, tile_s, num_heads,
                                               x.dtype.itemsize),
        ),
    )(x, x, w_qkv, b_qkv)


def bert_self_attention_reference(x, params, *, num_heads):
    """Pure-JAX f32 reference matching the PyTorch forward (default args)."""
    B, S, H = x.shape
    d = H // num_heads
    x32 = x.astype(jnp.float32)

    def heads(a):
        return a.reshape(B, S, num_heads, d).transpose(0, 2, 1, 3)

    q = heads(x32 @ params["wq"] + params["bq"])
    k = heads(x32 @ params["wk"] + params["bk"])
    v = heads(x32 @ params["wv"] + params["bv"])
    scores = jnp.einsum("bhqd,bhkd->bhqk", q, k) / math.sqrt(d)
    probs = jax.nn.softmax(scores, axis=-1)
    ctx = jnp.einsum("bhqk,bhkd->bhqd", probs, v)
    ctx = ctx.transpose(0, 2, 1, 3).reshape(B, S, H)
    return ctx.astype(x.dtype)


def init_params(key, hidden):
    ks = jax.random.split(key, 6)
    std = 0.02

    def w(k, shape):
        return jax.random.normal(k, shape, jnp.float32) * std

    return {
        "wq": w(ks[0], (hidden, hidden)), "bq": w(ks[1], (1, hidden)),
        "wk": w(ks[2], (hidden, hidden)), "bk": w(ks[3], (1, hidden)),
        "wv": w(ks[4], (hidden, hidden)), "bv": w(ks[5], (1, hidden)),
    }


if __name__ == "__main__":
    # Small BERT-like config: batch=2, seq=8, hidden=32, heads=4 (head_size=8).
    B, S, H, NH = 2, 8, 32, 4

    key = jax.random.PRNGKey(0)
    kx, kp = jax.random.split(key)
    x = jax.random.normal(kx, (B, S, H), jnp.float32)
    params = init_params(kp, H)

    try:
        out = jax.block_until_ready(
            bert_self_attention_pallas(x, params, num_heads=NH))
    except Exception:
        # Portability fallback (older Pallas versions): per-head attention core
        # and default double-buffered weight specs.  Same semantics.
        out = jax.block_until_ready(
            bert_self_attention_pallas(x, params, num_heads=NH,
                                       head_batched=False,
                                       single_buffer_weights=False))

    ref = bert_self_attention_reference(x, params, num_heads=NH)
    assert out.shape == (B, S, H)
    # bf16 matmul operands -> relaxed tolerance vs. the f32 reference.
    assert jnp.allclose(out, ref, atol=1e-2, rtol=1e-2), \
        float(jnp.max(jnp.abs(out - ref)))

    # TODO(synk): attention_mask / head_mask, cross-attention, past_key_value
    # cache and relative_key(_query) positional embeddings are not implemented
    # (non-default paths of the reference forward); dropout is eval-mode identity.
    print("KERNEL_OK")
</pallas_src>

<mosaic_0001>
module attributes {stable_mosaic.version = 11 : i64} {
  func.func @_self_attention_kernel(%arg0: i32, %arg1: i32, %arg2: memref<1x8x32xf32, #tpu.memory_space<vmem>>, %arg3: memref<1x8x32xf32, #tpu.memory_space<vmem>>, %arg4: memref<32x96xbf16, #tpu.memory_space<vmem>>, %arg5: memref<1x96xf32, #tpu.memory_space<vmem>>, %arg6: memref<1x8x32xf32, #tpu.memory_space<vmem>>) attributes {dimension_semantics = [#tpu.dimension_semantics<parallel>, #tpu.dimension_semantics<parallel>], iteration_bounds = array<i64: 2, 1>, scalar_prefetch = 0 : i64, scratch_operands = 0 : i64, tpu.core_type = #tpu.core_type<tc>, window_params = [{transform_indices = @transform_0, window_bounds = array<i64: 1, 8, 32>}, {transform_indices = @transform_1, window_bounds = array<i64: 1, 8, 32>}, {pipeline_mode = #tpu.pipeline_mode<synchronous>, transform_indices = @transform_2, window_bounds = array<i64: 32, 96>}, {pipeline_mode = #tpu.pipeline_mode<synchronous>, transform_indices = @transform_3, window_bounds = array<i64: 1, 96>}, {transform_indices = @transform_4, window_bounds = array<i64: 1, 8, 32>}]} {
    %c0 = arith.constant 0 : index
    %c0_0 = arith.constant 0 : index
    %c0_1 = arith.constant 0 : index
    %0 = vector.load %arg2[%c0, %c0_0, %c0_1] : memref<1x8x32xf32, #tpu.memory_space<vmem>>, vector<1x8x32xf32>
    %1 = vector.shape_cast %0 : vector<1x8x32xf32> to vector<8x32xf32>
    %2 = arith.truncf %1 : vector<8x32xf32> to vector<8x32xbf16>
    %c0_2 = arith.constant 0 : index
    %c0_3 = arith.constant 0 : index
    %c0_4 = arith.constant 0 : index
    %3 = vector.load %arg3[%c0_2, %c0_3, %c0_4] : memref<1x8x32xf32, #tpu.memory_space<vmem>>, vector<1x8x32xf32>
    %4 = vector.shape_cast %3 : vector<1x8x32xf32> to vector<8x32xf32>
    %5 = arith.truncf %4 : vector<8x32xf32> to vector<8x32xbf16>
    %c0_5 = arith.constant 0 : index
    %c0_6 = arith.constant 0 : index
    %6 = vector.load %arg4[%c0_5, %c0_6] : memref<32x96xbf16, #tpu.memory_space<vmem>>, vector<32x96xbf16>
    %c0_7 = arith.constant 0 : index
    %c0_8 = arith.constant 0 : index
    %7 = vector.load %arg5[%c0_7, %c0_8] : memref<1x96xf32, #tpu.memory_space<vmem>>, vector<1x96xf32>
    %8 = vector.extract_strided_slice %6 {offsets = [0, 0], sizes = [32, 32], strides = [1, 1]} : vector<32x96xbf16> to vector<32x32xbf16>
    %cst = arith.constant dense<0.000000e+00> : vector<8x32xf32>
    %9 = tpu.matmul %2, %8, %cst {dimension_numbers = #tpu.dot_dimension_numbers<[1], [0], [0], [1], [0, 0, 1, 1], [], []>} : vector<8x32xbf16>, vector<32x32xbf16>, vector<8x32xf32> -> vector<8x32xf32>
    %10 = vector.extract_strided_slice %7 {offsets = [0, 0], sizes = [1, 32], strides = [1, 1]} : vector<1x96xf32> to vector<1x32xf32>
    %11 = vector.broadcast %10 : vector<1x32xf32> to vector<8x32xf32>
    %12 = arith.addf %9, %11 : vector<8x32xf32>
    %13 = vector.extract_strided_slice %6 {offsets = [0, 32], sizes = [32, 64], strides = [1, 1]} : vector<32x96xbf16> to vector<32x64xbf16>
    %cst_9 = arith.constant dense<0.000000e+00> : vector<8x64xf32>
    %14 = tpu.matmul %5, %13, %cst_9 {dimension_numbers = #tpu.dot_dimension_numbers<[1], [0], [0], [1], [0, 0, 1, 1], [], []>} : vector<8x32xbf16>, vector<32x64xbf16>, vector<8x64xf32> -> vector<8x64xf32>
    %15 = vector.extract_strided_slice %7 {offsets = [0, 32], sizes = [1, 64], strides = [1, 1]} : vector<1x96xf32> to vector<1x64xf32>
    %16 = vector.broadcast %15 : vector<1x64xf32> to vector<8x64xf32>
    %17 = arith.addf %14, %16 : vector<8x64xf32>
    %18 = vector.extract_strided_slice %17 {offsets = [0, 0], sizes = [8, 32], strides = [1, 1]} : vector<8x64xf32> to vector<8x32xf32>
    %19 = vector.extract_strided_slice %17 {offsets = [0, 32], sizes = [8, 32], strides = [1, 1]} : vector<8x64xf32> to vector<8x32xf32>
    %cst_10 = arith.constant 0.353553385 : f32
    %20 = vector.broadcast %cst_10 : f32 to vector<8x32xf32>
    %21 = arith.mulf %12, %20 : vector<8x32xf32>
    %22 = vector.shape_cast %21 : vector<8x32xf32> to vector<8x4x8xf32>
    %23 = tpu.transpose %22, [1, 0, 2] : vector<8x4x8xf32> -> vector<4x8x8xf32>
    %24 = arith.truncf %23 : vector<4x8x8xf32> to vector<4x8x8xbf16>
    %25 = vector.shape_cast %18 : vector<8x32xf32> to vector<8x4x8xf32>
    %26 = tpu.transpose %25, [1, 0, 2] : vector<8x4x8xf32> -> vector<4x8x8xf32>
    %27 = arith.truncf %26 : vector<4x8x8xf32> to vector<4x8x8xbf16>
    %28 = vector.shape_cast %19 : vector<8x32xf32> to vector<8x4x8xf32>
    %29 = tpu.transpose %28, [1, 0, 2] : vector<8x4x8xf32> -> vector<4x8x8xf32>
    %30 = arith.truncf %29 : vector<4x8x8xf32> to vector<4x8x8xbf16>
    "tpu.trace_start"() <{level = 10 : i32, message = "hqd,hkd->hqk"}> : () -> ()
    %cst_11 = arith.constant dense<0.000000e+00> : vector<4x8x8xf32>
    %31 = tpu.matmul %24, %27, %cst_11 {dimension_numbers = #tpu.dot_dimension_numbers<[2], [2], [1], [1], [0, 0, 0, 1, 1, 1], [0], [0]>} : vector<4x8x8xbf16>, vector<4x8x8xbf16>, vector<4x8x8xf32> -> vector<4x8x8xf32>
    "tpu.trace_stop"() : () -> ()
    %cst_12 = arith.constant dense<0xFF800000> : vector<4x8xf32>
    %32 = vector.multi_reduction <maximumf>, %31, %cst_12 [2] : vector<4x8x8xf32> to vector<4x8xf32>
    %33 = vector.shape_cast %32 : vector<4x8xf32> to vector<4x8x1xf32>
    %34 = vector.broadcast %33 : vector<4x8x1xf32> to vector<4x8x8xf32>
    %35 = arith.subf %31, %34 : vector<4x8x8xf32>
    %36 = math.exp %35 : vector<4x8x8xf32>
    %cst_13 = arith.constant dense<0.000000e+00> : vector<4x8xf32>
    %37 = vector.multi_reduction <add>, %36, %cst_13 [2] : vector<4x8x8xf32> to vector<4x8xf32>
    %38 = vector.shape_cast %37 : vector<4x8xf32> to vector<4x8x1xf32>
    %39 = tpu.reciprocal %38 {approx = true} : vector<4x8x1xf32> -> vector<4x8x1xf32>
    %40 = vector.broadcast %39 : vector<4x8x1xf32> to vector<4x8x8xf32>
    %41 = arith.mulf %36, %40 : vector<4x8x8xf32>
    %42 = arith.truncf %41 : vector<4x8x8xf32> to vector<4x8x8xbf16>
    "tpu.trace_start"() <{level = 10 : i32, message = "hqk,hkd->hqd"}> : () -> ()
    %cst_14 = arith.constant dense<0.000000e+00> : vector<4x8x8xf32>
    %43 = tpu.matmul %42, %30, %cst_14 {dimension_numbers = #tpu.dot_dimension_numbers<[2], [1], [1], [2], [0, 0, 0, 1, 1, 2], [0], [0]>} : vector<4x8x8xbf16>, vector<4x8x8xbf16>, vector<4x8x8xf32> -> vector<4x8x8xf32>
    "tpu.trace_stop"() : () -> ()
    %44 = tpu.transpose %43, [1, 0, 2] : vector<4x8x8xf32> -> vector<8x4x8xf32>
    %45 = vector.shape_cast %44 : vector<8x4x8xf32> to vector<8x32xf32>
    %c0_15 = arith.constant 0 : index
    %c0_16 = arith.constant 0 : index
    %c0_17 = arith.constant 0 : index
    %46 = vector.load %arg6[%c0_15, %c0_16, %c0_17] : memref<1x8x32xf32, #tpu.memory_space<vmem>>, vector<1x8x32xf32>
    %47 = vector.shape_cast %46 : vector<1x8x32xf32> to vector<8x32xf32>
    %48 = vector.shape_cast %45 : vector<8x32xf32> to vector<1x8x32xf32>
    tpu.vector_store %arg6[%c0_15, %c0_16, %c0_17], %48 {strides = array<i32>} : memref<1x8x32xf32, #tpu.memory_space<vmem>>, vector<1x8x32xf32>,
    return
  }
  func.func @transform_0(%arg0: i32, %arg1: i32) -> (i32, i32, i32) {
    %c0_i32 = arith.constant 0 : i32
    %c0_i32_0 = arith.constant 0 : i32
    return %arg0, %arg1, %c0_i32 : i32, i32, i32
  }
  func.func @transform_1(%arg0: i32, %arg1: i32) -> (i32, i32, i32) {
    %c0_i32 = arith.constant 0 : i32
    %c0_i32_0 = arith.constant 0 : i32
    %c0_i32_1 = arith.constant 0 : i32
    return %arg0, %c0_i32, %c0_i32_0 : i32, i32, i32
  }
  func.func @transform_2(%arg0: i32, %arg1: i32) -> (i32, i32) {
    %c0_i32 = arith.constant 0 : i32
    %c0_i32_0 = arith.constant 0 : i32
    %c0_i32_1 = arith.constant 0 : i32
    return %c0_i32, %c0_i32_0 : i32, i32
  }
  func.func @transform_3(%arg0: i32, %arg1: i32) -> (i32, i32) {
    %c0_i32 = arith.constant 0 : i32
    %c0_i32_0 = arith.constant 0 : i32
    %c0_i32_1 = arith.constant 0 : i32
    return %c0_i32, %c0_i32_0 : i32, i32
  }
  func.func @transform_4(%arg0: i32, %arg1: i32) -> (i32, i32, i32) {
    %c0_i32 = arith.constant 0 : i32
    %c0_i32_0 = arith.constant 0 : i32
    return %arg0, %arg1, %c0_i32 : i32, i32, i32
  }
}

module attributes {stable_mosaic.version = 11 : i64} {
  func.func @_self_attention_kernel(%arg0: i32, %arg1: i32, %arg2: memref<1x8x32xf32, #tpu.memory_space<vmem>>, %arg3: memref<1x8x32xf32, #tpu.memory_space<vmem>>, %arg4: memref<32x96xbf16, #tpu.memory_space<vmem>>, %arg5: memref<1x96xf32, #tpu.memory_space<vmem>>, %arg6: memref<1x8x32xf32, #tpu.memory_space<vmem>>) attributes {dimension_semantics = [#tpu.dimension_semantics<parallel>, #tpu.dimension_semantics<parallel>], iteration_bounds = array<i64: 2, 1>, scalar_prefetch = 0 : i64, scratch_operands = 0 : i64, tpu.core_type = #tpu.core_type<tc>, window_params = [{transform_indices = @transform_0, window_bounds = array<i64: 1, 8, 32>}, {transform_indices = @transform_1, window_bounds = array<i64: 1, 8, 32>}, {pipeline_mode = #tpu.pipeline_mode<synchronous>, transform_indices = @transform_2, window_bounds = array<i64: 32, 96>}, {pipeline_mode = #tpu.pipeline_mode<synchronous>, transform_indices = @transform_3, window_bounds = array<i64: 1, 96>}, {transform_indices = @transform_4, window_bounds = array<i64: 1, 8, 32>}]} {
    %c0 = arith.constant 0 : index
    %c0_0 = arith.constant 0 : index
    %c0_1 = arith.constant 0 : index
    %0 = vector.load %arg2[%c0, %c0_0, %c0_1] : memref<1x8x32xf32, #tpu.memory_space<vmem>>, vector<1x8x32xf32>
    %1 = vector.shape_cast %0 : vector<1x8x32xf32> to vector<8x32xf32>
    %2 = arith.truncf %1 : vector<8x32xf32> to vector<8x32xbf16>
    %c0_2 = arith.constant 0 : index
    %c0_3 = arith.constant 0 : index
    %c0_4 = arith.constant 0 : index
    %3 = vector.load %arg3[%c0_2, %c0_3, %c0_4] : memref<1x8x32xf32, #tpu.memory_space<vmem>>, vector<1x8x32xf32>
    %4 = vector.shape_cast %3 : vector<1x8x32xf32> to vector<8x32xf32>
    %5 = arith.truncf %4 : vector<8x32xf32> to vector<8x32xbf16>
    %c0_5 = arith.constant 0 : index
    %c0_6 = arith.constant 0 : index
    %6 = vector.load %arg4[%c0_5, %c0_6] : memref<32x96xbf16, #tpu.memory_space<vmem>>, vector<32x96xbf16>
    %c0_7 = arith.constant 0 : index
    %c0_8 = arith.constant 0 : index
    %7 = vector.load %arg5[%c0_7, %c0_8] : memref<1x96xf32, #tpu.memory_space<vmem>>, vector<1x96xf32>
    %8 = vector.extract_strided_slice %6 {offsets = [0, 0], sizes = [32, 32], strides = [1, 1]} : vector<32x96xbf16> to vector<32x32xbf16>
    %cst = arith.constant dense<0.000000e+00> : vector<8x32xf32>
    %9 = tpu.matmul %2, %8, %cst {dimension_numbers = #tpu.dot_dimension_numbers<[1], [0], [0], [1], [0, 0, 1, 1], [], []>} : vector<8x32xbf16>, vector<32x32xbf16>, vector<8x32xf32> -> vector<8x32xf32>
    %10 = vector.extract_strided_slice %7 {offsets = [0, 0], sizes = [1, 32], strides = [1, 1]} : vector<1x96xf32> to vector<1x32xf32>
    %11 = vector.broadcast %10 : vector<1x32xf32> to vector<8x32xf32>
    %12 = arith.addf %9, %11 : vector<8x32xf32>
    %13 = vector.extract_strided_slice %6 {offsets = [0, 32], sizes = [32, 64], strides = [1, 1]} : vector<32x96xbf16> to vector<32x64xbf16>
    %cst_9 = arith.constant dense<0.000000e+00> : vector<8x64xf32>
    %14 = tpu.matmul %5, %13, %cst_9 {dimension_numbers = #tpu.dot_dimension_numbers<[1], [0], [0], [1], [0, 0, 1, 1], [], []>} : vector<8x32xbf16>, vector<32x64xbf16>, vector<8x64xf32> -> vector<8x64xf32>
    %15 = vector.extract_strided_slice %7 {offsets = [0, 32], sizes = [1, 64], strides = [1, 1]} : vector<1x96xf32> to vector<1x64xf32>
    %16 = vector.broadcast %15 : vector<1x64xf32> to vector<8x64xf32>
    %17 = arith.addf %14, %16 : vector<8x64xf32>
    %18 = vector.extract_strided_slice %17 {offsets = [0, 0], sizes = [8, 32], strides = [1, 1]} : vector<8x64xf32> to vector<8x32xf32>
    %19 = vector.extract_strided_slice %17 {offsets = [0, 32], sizes = [8, 32], strides = [1, 1]} : vector<8x64xf32> to vector<8x32xf32>
    %cst_10 = arith.constant 0.353553385 : f32
    %20 = vector.broadcast %cst_10 : f32 to vector<8x32xf32>
    %21 = arith.mulf %12, %20 : vector<8x32xf32>
    %22 = vector.extract_strided_slice %21 {offsets = [0, 0], sizes = [8, 8], strides = [1, 1]} : vector<8x32xf32> to vector<8x8xf32>
    %23 = vector.extract_strided_slice %18 {offsets = [0, 0], sizes = [8, 8], strides = [1, 1]} : vector<8x32xf32> to vector<8x8xf32>
    %24 = vector.extract_strided_slice %19 {offsets = [0, 0], sizes = [8, 8], strides = [1, 1]} : vector<8x32xf32> to vector<8x8xf32>
    %25 = tpu.transpose %23, [1, 0] : vector<8x8xf32> -> vector<8x8xf32>
    %cst_11 = arith.constant dense<0.000000e+00> : vector<8x8xf32>
    %26 = tpu.matmul %22, %25, %cst_11 {dimension_numbers = #tpu.dot_dimension_numbers<[1], [0], [0], [1], [0, 0, 1, 1], [], []>} : vector<8x8xf32>, vector<8x8xf32>, vector<8x8xf32> -> vector<8x8xf32>
    %cst_12 = arith.constant dense<0xFF800000> : vector<8xf32>
    %27 = vector.multi_reduction <maximumf>, %26, %cst_12 [1] : vector<8x8xf32> to vector<8xf32>
    %28 = vector.shape_cast %27 : vector<8xf32> to vector<8x1xf32>
    %29 = vector.broadcast %28 : vector<8x1xf32> to vector<8x8xf32>
    %30 = arith.subf %26, %29 : vector<8x8xf32>
    %31 = math.exp %30 : vector<8x8xf32>
    %cst_13 = arith.constant dense<0.000000e+00> : vector<8xf32>
    %32 = vector.multi_reduction <add>, %31, %cst_13 [1] : vector<8x8xf32> to vector<8xf32>
    %33 = vector.shape_cast %32 : vector<8xf32> to vector<8x1xf32>
    %34 = tpu.reciprocal %33 {approx = true} : vector<8x1xf32> -> vector<8x1xf32>
    %35 = vector.broadcast %34 : vector<8x1xf32> to vector<8x8xf32>
    %36 = arith.mulf %31, %35 : vector<8x8xf32>
    %cst_14 = arith.constant dense<0.000000e+00> : vector<8x8xf32>
    %37 = tpu.matmul %36, %24, %cst_14 {dimension_numbers = #tpu.dot_dimension_numbers<[1], [0], [0], [1], [0, 0, 1, 1], [], []>} : vector<8x8xf32>, vector<8x8xf32>, vector<8x8xf32> -> vector<8x8xf32>
    %38 = vector.extract_strided_slice %21 {offsets = [0, 8], sizes = [8, 8], strides = [1, 1]} : vector<8x32xf32> to vector<8x8xf32>
    %39 = vector.extract_strided_slice %18 {offsets = [0, 8], sizes = [8, 8], strides = [1, 1]} : vector<8x32xf32> to vector<8x8xf32>
    %40 = vector.extract_strided_slice %19 {offsets = [0, 8], sizes = [8, 8], strides = [1, 1]} : vector<8x32xf32> to vector<8x8xf32>
    %41 = tpu.transpose %39, [1, 0] : vector<8x8xf32> -> vector<8x8xf32>
    %cst_15 = arith.constant dense<0.000000e+00> : vector<8x8xf32>
    %42 = tpu.matmul %38, %41, %cst_15 {dimension_numbers = #tpu.dot_dimension_numbers<[1], [0], [0], [1], [0, 0, 1, 1], [], []>} : vector<8x8xf32>, vector<8x8xf32>, vector<8x8xf32> -> vector<8x8xf32>
    %cst_16 = arith.constant dense<0xFF800000> : vector<8xf32>
    %43 = vector.multi_reduction <maximumf>, %42, %cst_16 [1] : vector<8x8xf32> to vector<8xf32>
    %44 = vector.shape_cast %43 : vector<8xf32> to vector<8x1xf32>
    %45 = vector.broadcast %44 : vector<8x1xf32> to vector<8x8xf32>
    %46 = arith.subf %42, %45 : vector<8x8xf32>
    %47 = math.exp %46 : vector<8x8xf32>
    %cst_17 = arith.constant dense<0.000000e+00> : vector<8xf32>
    %48 = vector.multi_reduction <add>, %47, %cst_17 [1] : vector<8x8xf32> to vector<8xf32>
    %49 = vector.shape_cast %48 : vector<8xf32> to vector<8x1xf32>
    %50 = tpu.reciprocal %49 {approx = true} : vector<8x1xf32> -> vector<8x1xf32>
    %51 = vector.broadcast %50 : vector<8x1xf32> to vector<8x8xf32>
    %52 = arith.mulf %47, %51 : vector<8x8xf32>
    %cst_18 = arith.constant dense<0.000000e+00> : vector<8x8xf32>
    %53 = tpu.matmul %52, %40, %cst_18 {dimension_numbers = #tpu.dot_dimension_numbers<[1], [0], [0], [1], [0, 0, 1, 1], [], []>} : vector<8x8xf32>, vector<8x8xf32>, vector<8x8xf32> -> vector<8x8xf32>
    %54 = vector.extract_strided_slice %21 {offsets = [0, 16], sizes = [8, 8], strides = [1, 1]} : vector<8x32xf32> to vector<8x8xf32>
    %55 = vector.extract_strided_slice %18 {offsets = [0, 16], sizes = [8, 8], strides = [1, 1]} : vector<8x32xf32> to vector<8x8xf32>
    %56 = vector.extract_strided_slice %19 {offsets = [0, 16], sizes = [8, 8], strides = [1, 1]} : vector<8x32xf32> to vector<8x8xf32>
    %57 = tpu.transpose %55, [1, 0] : vector<8x8xf32> -> vector<8x8xf32>
    %cst_19 = arith.constant dense<0.000000e+00> : vector<8x8xf32>
    %58 = tpu.matmul %54, %57, %cst_19 {dimension_numbers = #tpu.dot_dimension_numbers<[1], [0], [0], [1], [0, 0, 1, 1], [], []>} : vector<8x8xf32>, vector<8x8xf32>, vector<8x8xf32> -> vector<8x8xf32>
    %cst_20 = arith.constant dense<0xFF800000> : vector<8xf32>
    %59 = vector.multi_reduction <maximumf>, %58, %cst_20 [1] : vector<8x8xf32> to vector<8xf32>
    %60 = vector.shape_cast %59 : vector<8xf32> to vector<8x1xf32>
    %61 = vector.broadcast %60 : vector<8x1xf32> to vector<8x8xf32>
    %62 = arith.subf %58, %61 : vector<8x8xf32>
    %63 = math.exp %62 : vector<8x8xf32>
    %cst_21 = arith.constant dense<0.000000e+00> : vector<8xf32>
    %64 = vector.multi_reduction <add>, %63, %cst_21 [1] : vector<8x8xf32> to vector<8xf32>
    %65 = vector.shape_cast %64 : vector<8xf32> to vector<8x1xf32>
    %66 = tpu.reciprocal %65 {approx = true} : vector<8x1xf32> -> vector<8x1xf32>
    %67 = vector.broadcast %66 : vector<8x1xf32> to vector<8x8xf32>
    %68 = arith.mulf %63, %67 : vector<8x8xf32>
    %cst_22 = arith.constant dense<0.000000e+00> : vector<8x8xf32>
    %69 = tpu.matmul %68, %56, %cst_22 {dimension_numbers = #tpu.dot_dimension_numbers<[1], [0], [0], [1], [0, 0, 1, 1], [], []>} : vector<8x8xf32>, vector<8x8xf32>, vector<8x8xf32> -> vector<8x8xf32>
    %70 = vector.extract_strided_slice %21 {offsets = [0, 24], sizes = [8, 8], strides = [1, 1]} : vector<8x32xf32> to vector<8x8xf32>
    %71 = vector.extract_strided_slice %18 {offsets = [0, 24], sizes = [8, 8], strides = [1, 1]} : vector<8x32xf32> to vector<8x8xf32>
    %72 = vector.extract_strided_slice %19 {offsets = [0, 24], sizes = [8, 8], strides = [1, 1]} : vector<8x32xf32> to vector<8x8xf32>
    %73 = tpu.transpose %71, [1, 0] : vector<8x8xf32> -> vector<8x8xf32>
    %cst_23 = arith.constant dense<0.000000e+00> : vector<8x8xf32>
    %74 = tpu.matmul %70, %73, %cst_23 {dimension_numbers = #tpu.dot_dimension_numbers<[1], [0], [0], [1], [0, 0, 1, 1], [], []>} : vector<8x8xf32>, vector<8x8xf32>, vector<8x8xf32> -> vector<8x8xf32>
    %cst_24 = arith.constant dense<0xFF800000> : vector<8xf32>
    %75 = vector.multi_reduction <maximumf>, %74, %cst_24 [1] : vector<8x8xf32> to vector<8xf32>
    %76 = vector.shape_cast %75 : vector<8xf32> to vector<8x1xf32>
    %77 = vector.broadcast %76 : vector<8x1xf32> to vector<8x8xf32>
    %78 = arith.subf %74, %77 : vector<8x8xf32>
    %79 = math.exp %78 : vector<8x8xf32>
    %cst_25 = arith.constant dense<0.000000e+00> : vector<8xf32>
    %80 = vector.multi_reduction <add>, %79, %cst_25 [1] : vector<8x8xf32> to vector<8xf32>
    %81 = vector.shape_cast %80 : vector<8xf32> to vector<8x1xf32>
    %82 = tpu.reciprocal %81 {approx = true} : vector<8x1xf32> -> vector<8x1xf32>
    %83 = vector.broadcast %82 : vector<8x1xf32> to vector<8x8xf32>
    %84 = arith.mulf %79, %83 : vector<8x8xf32>
    %cst_26 = arith.constant dense<0.000000e+00> : vector<8x8xf32>
    %85 = tpu.matmul %84, %72, %cst_26 {dimension_numbers = #tpu.dot_dimension_numbers<[1], [0], [0], [1], [0, 0, 1, 1], [], []>} : vector<8x8xf32>, vector<8x8xf32>, vector<8x8xf32> -> vector<8x8xf32>
    %86 = tpu.concatenate %37, %53, %69, %85 in 1 : vector<8x8xf32>, vector<8x8xf32>, vector<8x8xf32>, vector<8x8xf32> -> vector<8x32xf32>
    %c0_27 = arith.constant 0 : index
    %c0_28 = arith.constant 0 : index
    %c0_29 = arith.constant 0 : index
    %87 = vector.load %arg6[%c0_27, %c0_28, %c0_29] : memref<1x8x32xf32, #tpu.memory_space<vmem>>, vector<1x8x32xf32>
    %88 = vector.shape_cast %87 : vector<1x8x32xf32> to vector<8x32xf32>
    %89 = vector.shape_cast %86 : vector<8x32xf32> to vector<1x8x32xf32>
    tpu.vector_store %arg6[%c0_27, %c0_28, %c0_29], %89 {strides = array<i32>} : memref<1x8x32xf32, #tpu.memory_space<vmem>>, vector<1x8x32xf32>,
    return
  }
  func.func @transform_0(%arg0: i32, %arg1: i32) -> (i32, i32, i32) {
    %c0_i32 = arith.constant 0 : i32
    %c0_i32_0 = arith.constant 0 : i32
    return %arg0, %arg1, %c0_i32 : i32, i32, i32
  }
  func.func @transform_1(%arg0: i32, %arg1: i32) -> (i32, i32, i32) {
    %c0_i32 = arith.constant 0 : i32
    %c0_i32_0 = arith.constant 0 : i32
    %c0_i32_1 = arith.constant 0 : i32
    return %arg0, %c0_i32, %c0_i32_0 : i32, i32, i32
  }
  func.func @transform_2(%arg0: i32, %arg1: i32) -> (i32, i32) {
    %c0_i32 = arith.constant 0 : i32
    %c0_i32_0 = arith.constant 0 : i32
    %c0_i32_1 = arith.constant 0 : i32
    return %c0_i32, %c0_i32_0 : i32, i32
  }
  func.func @transform_3(%arg0: i32, %arg1: i32) -> (i32, i32) {
    %c0_i32 = arith.constant 0 : i32
    %c0_i32_0 = arith.constant 0 : i32
    %c0_i32_1 = arith.constant 0 : i32
    return %c0_i32, %c0_i32_0 : i32, i32
  }
  func.func @transform_4(%arg0: i32, %arg1: i32) -> (i32, i32, i32) {
    %c0_i32 = arith.constant 0 : i32
    %c0_i32_0 = arith.constant 0 : i32
    return %arg0, %arg1, %c0_i32 : i32, i32, i32
  }
}

</mosaic_0001>

<llo_original>
// kernel: tpu_custom_call.1
$region0: #{tpu_custom_call.1}
  #allocation0 [shape = 'u32[]', space=smem, size = 0x4, offset = 0x4, fixed_abs, tag = 'smem constant byte address 0x4 - core index']
  #allocation1 [shape = 'u32[144,128]{1,0:T(1,128)}', space=vmem, size = 0x12000, scoped, tag = 'internal scratch']
  %s0 = inlined_call_operand.hbm [shape: f32[2,8,32], index: 0, kind: input, shape index: {}]
  %s1 = inlined_call_operand.hbm [shape: f32[2,8,32], index: 1, kind: input, shape index: {}]
  %s2 = inlined_call_operand.hbm [shape: bf16[32,96], index: 2, kind: input, shape index: {}]
  %s3 = inlined_call_operand.vmem [shape: f32[1,96], index: 3, kind: input, shape index: {}]
  %s4 = inlined_call_operand.hbm [shape: f32[2,8,32], index: 4, kind: output, shape index: {}]
  %s5 = sld [smem:[#allocation0]]
  $region61: #{tpu_custom_call.1} parent=0
    _
  %s7 = ssub.s32 1, %s5
  %s8 = scalar_select 0, %s7, %s5
  $region1: #{tpu_custom_call.1} parent=0
    #allocation2 [shape = 'u8[8192]{0}', space=vmem, size = 0x2000, scoped, tag = 'input window, operand 0']
    #allocation3 [shape = 's32[2]{0}', space=sflag, size = 0x8, scoped, tag = 'scoped memory for tpu_custom_call.1']
    #allocation4 [shape = 's32[2]{0}', space=sflag, size = 0x8, scoped, tag = 'scoped memory for tpu_custom_call.1']
    #allocation5 [shape = 'u8[8192]{0}', space=vmem, size = 0x2000, scoped, tag = 'input window, operand 1']
    #allocation6 [shape = 's32[2]{0}', space=sflag, size = 0x8, scoped, tag = 'scoped memory for tpu_custom_call.1']
    #allocation7 [shape = 'u8[8192]{0}', space=vmem, size = 0x2000, scoped, tag = 'input window, operand 2, single buffered']
    #allocation8 [shape = 'u8[8192]{0}', space=vmem, size = 0x2000, scoped, tag = 'output window, operand 0']
    %9 = vsyncpa [#allocation3], 0
    %s10 = scalar_lea.sflag [#allocation3], 1
    %11 = vsyncpa %s10, 0
    %12 = vsyncpa [#allocation6], 0
    %s13 = scalar_lea.sflag [#allocation6], 1
    %14 = vsyncpa %s13, 0
    %15 = vsyncpa [#allocation4], 0
    %s16 = scalar_lea.sflag [#allocation4], 1
    %17 = vsyncpa %s16, 0
    loop: start=0, step=1, limit=4
    $region2: #{tpu_custom_call.1} parent=1 // loop_pre_header
      _
    $region3: #{tpu_custom_call.1} parent=1 // loop_header
      %s19 = sphi 0, %s23
      %p20 = scmp.ge.s32.totalorder %s19, 4
      %s26 = sphi 0, %s38
      %s27 = sphi 0, %s34
      %s28 = sphi 0, %s26
      %s29 = sphi 0, %s27
      %s30 = sphi 0, %s28
      %s31 = sphi 0, %s29
      %s43 = sphi 0, %s45
      %s46 = sphi 0, %s43
      %s47 = sphi 0, %s46
      %s63 = sphi 0, %s47
      %s69 = sphi 0, %s71
      %s72 = sphi 0, %s69
      %s73 = sphi 0, %s72
      %s89 = sphi 0, %s73
      %s93 = sphi 0, %s93
      %s95 = sphi 0, %s93
      %s96 = sphi 0, %s95
      %s110 = sphi 0, %s96
      %s114 = sphi 0, %s114
      %s116 = sphi 0, %s114
      %s117 = sphi 0, %s116
      %s131 = sphi 0, %s117
      %s139 = sphi 0, %s141
      %s142 = sphi 0, %s139
      %s143 = sphi 0, %s142
      %s159 = sphi 0, %s143
    $region4: #{tpu_custom_call.1} parent=1 // loop_header_branch
      %22 = sbr.rel (%p20) target = $region8
    $region5: #{tpu_custom_call.1} parent=1 // loop_body
      %s24 = ssub.s32 %s19, 1
      %s25 = ssub.s32 %s19, 2
      %s32 = sadd.s32 1, %s27
      %p33 = scmp.ge.s32.totalorder %s32, 1
      %s34 = scalar_select %p33, 0, %s32
      %s35 = sadd.s32 1, %s26
      %s36 = scalar_select %p33, %s35, %s26
      %p37 = scmp.ge.s32.totalorder %s36, 2
      %s38 = scalar_select %p37, 0, %s36
      %s39 = ssub.s32 %s26, %s38
      %s40 = ssub.s32 %s27, %s34
      %s41 = sor.u32 %s39, %s40
      %p42 = scmp.eq.s32.totalorder %s41, 0
      %s44 = sadd.s32 %s43, 1
      %s45 = scalar_select %p42, %s43, %s44
      %p48 = pneg %p42
      %p49 = scmp.eq.s32.totalorder %s19, 1
      %p50 = por %p48, %p49
      %p51 = scmp.ne.s32.totalorder %s43, %s46
      %p52 = scmp.eq.s32.totalorder %s19, 0
      %p53 = por %p51, %p52
      %p54 = scmp.ne.s32.totalorder %s43, %s46
      %p55 = scmp.eq.s32.totalorder %s24, 1
      %p56 = por %p54, %p55
      %p57 = scmp.ne.s32.totalorder %s46, %s47
      %p58 = scmp.eq.s32.totalorder %s24, 0
      %p59 = por %p57, %p58
      %p60 = scmp.ne.s32.totalorder %s46, %s47
      %p61 = scmp.eq.s32.totalorder %s25, 1
      %p62 = por %p60, %p61
      %p64 = scmp.ne.s32.totalorder %s47, %s63
      %p65 = scmp.eq.s32.totalorder %s25, 0
      %p66 = por %p64, %p65
      %s67 = ssub.s32 %s26, %s38
      %p68 = scmp.eq.s32.totalorder %s67, 0
      %s70 = sadd.s32 %s69, 1
      %s71 = scalar_select %p68, %s69, %s70
      %p74 = pneg %p68
      %p75 = scmp.eq.s32.totalorder %s19, 1
      %p76 = por %p74, %p75
      %p77 = scmp.ne.s32.totalorder %s69, %s72
      %p78 = scmp.eq.s32.totalorder %s19, 0
      %p79 = por %p77, %p78
      %p80 = scmp.ne.s32.totalorder %s69, %s72
      %p81 = scmp.eq.s32.totalorder %s24, 1
      %p82 = por %p80, %p81
      %p83 = scmp.ne.s32.totalorder %s72, %s73
      %p84 = scmp.eq.s32.totalorder %s24, 0
      %p85 = por %p83, %p84
      %p86 = scmp.ne.s32.totalorder %s72, %s73
      %p87 = scmp.eq.s32.totalorder %s25, 1
      %p88 = por %p86, %p87
      %p90 = scmp.ne.s32.totalorder %s73, %s89
      %p91 = scmp.eq.s32.totalorder %s25, 0
      %p92 = por %p90, %p91
      %s94 = sadd.s32 %s93, 1
      %p97 = scmp.eq.s32.totalorder %s19, 1
      %p98 = scmp.ne.s32.totalorder %s93, %s95
      %p99 = scmp.eq.s32.totalorder %s19, 0
      %p100 = por %p98, %p99
      %p101 = scmp.ne.s32.totalorder %s93, %s95
      %p102 = scmp.eq.s32.totalorder %s24, 1
      %p103 = por %p101, %p102
      %p104 = scmp.ne.s32.totalorder %s95, %s96
      %p105 = scmp.eq.s32.totalorder %s24, 0
      %p106 = por %p104, %p105
      %p107 = scmp.ne.s32.totalorder %s95, %s96
      %p108 = scmp.eq.s32.totalorder %s25, 1
      %p109 = por %p107, %p108
      %p111 = scmp.ne.s32.totalorder %s96, %s110
      %p112 = scmp.eq.s32.totalorder %s25, 0
      %p113 = por %p111, %p112
      %s115 = sadd.s32 %s114, 1
      %p118 = scmp.eq.s32.totalorder %s19, 1
      %p119 = scmp.ne.s32.totalorder %s114, %s116
      %p120 = scmp.eq.s32.totalorder %s19, 0
      %p121 = por %p119, %p120
      %p122 = scmp.ne.s32.totalorder %s114, %s116
      %p123 = scmp.eq.s32.totalorder %s24, 1
      %p124 = por %p122, %p123
      %p125 = scmp.ne.s32.totalorder %s116, %s117
      %p126 = scmp.eq.s32.totalorder %s24, 0
      %p127 = por %p125, %p126
      %p128 = scmp.ne.s32.totalorder %s116, %s117
      %p129 = scmp.eq.s32.totalorder %s25, 1
      %p130 = por %p128, %p129
      %p132 = scmp.ne.s32.totalorder %s117, %s131
      %p133 = scmp.eq.s32.totalorder %s25, 0
      %p134 = por %p132, %p133
      %s135 = ssub.s32 %s26, %s38
      %s136 = ssub.s32 %s27, %s34
      %s137 = sor.u32 %s135, %s136
      %p138 = scmp.eq.s32.totalorder %s137, 0
      %s140 = sadd.s32 %s139, 1
      %s141 = scalar_select %p138, %s139, %s140
      %p144 = pneg %p138
      %p145 = scmp.eq.s32.totalorder %s19, 1
      %p146 = por %p144, %p145
      %p147 = scmp.ne.s32.totalorder %s139, %s142
      %p148 = scmp.eq.s32.totalorder %s19, 0
      %p149 = por %p147, %p148
      %p150 = scmp.ne.s32.totalorder %s139, %s142
      %p151 = scmp.eq.s32.totalorder %s24, 1
      %p152 = por %p150, %p151
      %p153 = scmp.ne.s32.totalorder %s142, %s143
      %p154 = scmp.eq.s32.totalorder %s24, 0
      %p155 = por %p153, %p154
      %p156 = scmp.ne.s32.totalorder %s142, %s143
      %p157 = scmp.eq.s32.totalorder %s25, 1
      %p158 = por %p156, %p157
      %p160 = scmp.ne.s32.totalorder %s143, %s159
      %p161 = scmp.eq.s32.totalorder %s25, 0
      %p162 = por %p160, %p161
      %p163 = scmp.le.s32.totalorder 1, %s19
      %p164 = scmp.lt.s32.totalorder %s19, 3
      %p165 = pnand %p163, %p164
      %p166 = pneg %p165
      // Predicated region
      $region9: #{tpu_custom_call.1} parent=5 // pred_check
        _
      $region10: #{tpu_custom_call.1} parent=5 // pred_check_branch
        %168 = sbr.rel (%p165) target = $region12
      $region11: #{tpu_custom_call.1} parent=5 // pred_region
        %s169 = ssub.s32 %s19, 1
        // Predicated region
        $region13: #{tpu_custom_call.1} parent=11 // pred_check
          %p170 = pneg %p106
        $region14: #{tpu_custom_call.1} parent=11 // pred_check_branch
          %172 = sbr.rel (%p170) target = $region16
        $region15: #{tpu_custom_call.1} parent=11 // pred_region
          %s174 = ssub.s32 256, 256
          %175 = vsyncadd [#allocation6], %s174
          %s176 = sshll.u32 [#allocation7], 4
          %s177 = int_to_ptr.vmem [resolvable:$true] %s176
          %182 = dma.hbm_to_vmem [thread:$0]  %s2, 256, %s177, [#allocation6], 64, 64, 4
        $region16: #{tpu_custom_call.1} parent=11 // pred_fallthru
          _
        // Predicated region
        $region17: #{tpu_custom_call.1} parent=11 // pred_check
          %p183 = pneg %p127
        $region18: #{tpu_custom_call.1} parent=11 // pred_check_branch
          %185 = sbr.rel (%p183) target = $region20
        $region19: #{tpu_custom_call.1} parent=11 // pred_region
          _
        $region20: #{tpu_custom_call.1} parent=11 // pred_fallthru
          _
      $region12: #{tpu_custom_call.1} parent=5 // pred_fallthru
        _
      %p186 = scmp.lt.s32.totalorder %s19, 2
      // Predicated region
      $region21: #{tpu_custom_call.1} parent=5 // pred_check
        %p187 = pneg %p186
      $region22: #{tpu_custom_call.1} parent=5 // pred_check_branch
        %189 = sbr.rel (%p187) target = $region24
      $region23: #{tpu_custom_call.1} parent=5 // pred_region
        // Predicated region
        $region25: #{tpu_custom_call.1} parent=23 // pred_check
          %p190 = pneg %p53
        $region26: #{tpu_custom_call.1} parent=23 // pred_check_branch
          %192 = sbr.rel (%p190) target = $region28
        $region27: #{tpu_custom_call.1} parent=23 // pred_region
          %s193 = sand.u32 %s43, 1
          %s194 = scalar_lea.sflag [#allocation3], %s193
          %s195 = sand.u32 %s43, 1
          %s196 = smul.addr %s195, 8
          %s197 = scalar_lea.vmem [#allocation2], %s196
          %s199 = ssub.s32 128, 128
          %200 = vsyncadd %s194, %s199
          %s201 = sadd.s32 %s27, %s26
          %s202 = smul.addr %s201, 128
          %s203 = scalar_lea.hbm %s0, %s202
          %s205 = sshll.u32 %s197, 4
          %s206 = int_to_ptr.vmem [resolvable:$true] %s205
          %208 = dma.hbm_to_vmem [thread:$0]  %s203, 128, %s206, %s194
        $region28: #{tpu_custom_call.1} parent=23 // pred_fallthru
          _
        // Predicated region
        $region29: #{tpu_custom_call.1} parent=23 // pred_check
          %p209 = pneg %p79
        $region30: #{tpu_custom_call.1} parent=23 // pred_check_branch
          %211 = sbr.rel (%p209) target = $region32
        $region31: #{tpu_custom_call.1} parent=23 // pred_region
          %s212 = sand.u32 %s19, 1
          %s213 = scalar_lea.sflag [#allocation6], %s212
          %s214 = sand.u32 %s69, 1
          %s215 = smul.addr %s214, 8
          %s216 = scalar_lea.vmem [#allocation5], %s215
          %s218 = ssub.s32 128, 128
          %219 = vsyncadd %s213, %s218
          %s220 = smul.addr %s26, 128
          %s221 = scalar_lea.hbm %s1, %s220
          %s223 = sshll.u32 %s216, 4
          %s224 = int_to_ptr.vmem [resolvable:$true] %s223
          %226 = dma.hbm_to_vmem [thread:$0]  %s221, 128, %s224, %s213
        $region32: #{tpu_custom_call.1} parent=23 // pred_fallthru
          _
      $region24: #{tpu_custom_call.1} parent=5 // pred_fallthru
        _
      %p227 = scmp.le.s32.totalorder 1, %s19
      %p228 = scmp.lt.s32.totalorder %s19, 3
      %p229 = pnand %p227, %p228
      %p230 = pneg %p229
      // Predicated region
      $region33: #{tpu_custom_call.1} parent=5 // pred_check
        _
      $region34: #{tpu_custom_call.1} parent=5 // pred_check_branch
        %232 = sbr.rel (%p229) target = $region36
      $region35: #{tpu_custom_call.1} parent=5 // pred_region
        %s233 = ssub.s32 %s19, 1
        %s234 = sand.u32 %s46, 1
        %s235 = scalar_lea.sflag [#allocation3], %s234
        %s236 = sand.u32 %s46, 1
        %s237 = smul.addr %s236, 8
        %s238 = scalar_lea.vmem [#allocation2], %s237
        // Predicated region
        $region37: #{tpu_custom_call.1} parent=35 // pred_check
          %p239 = pneg %p59
        $region38: #{tpu_custom_call.1} parent=35 // pred_check_branch
          %241 = sbr.rel (%p239) target = $region40
        $region39: #{tpu_custom_call.1} parent=35 // pred_region
          %242 = dma.done %s235, 128
        $region40: #{tpu_custom_call.1} parent=35 // pred_fallthru
          _
        %s243 = sand.u32 %s24, 1
        %s244 = scalar_lea.sflag [#allocation6], %s243
        %s245 = sand.u32 %s72, 1
        %s246 = smul.addr %s245, 8
        %s247 = scalar_lea.vmem [#allocation5], %s246
        // Predicated region
        $region41: #{tpu_custom_call.1} parent=35 // pred_check
          %p248 = pneg %p85
        $region42: #{tpu_custom_call.1} parent=35 // pred_check_branch
          %250 = sbr.rel (%p248) target = $region44
        $region43: #{tpu_custom_call.1} parent=35 // pred_region
          %251 = dma.done %s244, 128
        $region44: #{tpu_custom_call.1} parent=35 // pred_fallthru
          _
        // Predicated region
        $region45: #{tpu_custom_call.1} parent=35 // pred_check
          %p252 = pneg %p106
        $region46: #{tpu_custom_call.1} parent=35 // pred_check_branch
          %254 = sbr.rel (%p252) target = $region48
        $region47: #{tpu_custom_call.1} parent=35 // pred_region
          %255 = dma.done [#allocation6], 256
        $region48: #{tpu_custom_call.1} parent=35 // pred_fallthru
          _
        %s256 = sand.u32 %s46, 1
        %s257 = scalar_lea.sflag [#allocation3], %s256
        %s258 = sand.u32 %s46, 1
        %s259 = smul.addr %s258, 8
        %s260 = scalar_lea.vmem [#allocation2], %s259
        %p261 = pneg %p59
        %p262 = pneg %p56
        %s263 = sand.u32 %s24, 1
        %s264 = scalar_lea.sflag [#allocation6], %s263
        %s265 = sand.u32 %s72, 1
        %s266 = smul.addr %s265, 8
        %s267 = scalar_lea.vmem [#allocation5], %s266
        %p268 = pneg %p85
        %p269 = pneg %p82
        %p270 = pneg %p106
        %p271 = pneg %p103
        %p272 = pneg %p127
        %p273 = pneg %p124
        %p274 = pneg %p155
        %p275 = pneg %p152
        %s276 = sand.u32 %s142, 1
        %s277 = scalar_lea.sflag [#allocation4], %s276
        %s278 = sand.u32 %s142, 1
        %s279 = smul.addr %s278, 8
        %s280 = scalar_lea.vmem [#allocation8], %s279
        %v282 = vld [vmem:[%s238] sm:$0xff]
        %v283 = vpack.c.bf16 %v282, %v282
        %v284 = vld [vmem:[%s247] sm:$0xff]
        %v285 = vpack.c.bf16 %v284, %v284
        %v286 = vld [vmem:[#allocation7] sm:$0xf]
        %v287 = vld [vmem:[#allocation7 + $0x4] sm:$0xf]
        %v288 = vld [vmem:[#allocation7 + $0x8] sm:$0xf]
        %v289 = vld [vmem:[#allocation7 + $0xc] sm:$0xf]
        %v290 = vld [vmem:[%s3] sm:$0x1]
        %v292 = vlaneseq
        %v293 = vshrl.u32 %v292, 7
        %v294 = vsub.s32 0, %v293
        %v295 = vrot.slane %v290, %v294
        %v301 = vunpack.c.l.b16 %v286
        %v302 = vunpack.c.l.b16 %v287
        %v303 = vunpack.c.l.b16 %v288
        %v304 = vunpack.c.l.b16 %v289
        %v305 = vpack.c.b16 %v302, %v301
        %v306 = vpack.c.b16 %v304, %v303
        %vm309 = vcmask 261120
        %v311 = vsel %vm309, %v283, 0
        %313 = vmatprep.subr.bf16.mxu0 0
        %314 = vmatpush1.bf16.msra.mxu0 0
        %315 = vmatprep.subr.bf16.mxu0 0
        %316 = vmatpush1.bf16.msra.mxu0 0
        %317 = vmatprep.subr.bf16.mxu0 0
        %318 = vmatpush1.bf16.msra.mxu0 0
        %319 = vmatprep.subr.bf16.mxu0 0
        %320 = vmatpush1.bf16.msra.mxu0 0
        %321 = vmatprep.subr.bf16.mxu0 0
        %322 = vmatpush1.bf16.msra.mxu0 0
        %323 = vmatprep.subr.bf16.mxu0 0
        %324 = vmatpush1.bf16.msra.mxu0 0
        %325 = vmatprep.subr.bf16.mxu0 0
        %326 = vmatpush1.bf16.msra.mxu0 %v306
        %327 = vmatprep.subr.bf16.mxu0 0
        %328 = vmatpush1.bf16.msra.mxu0 %v305
        %329 = vmatprep.subr.bf16.mxu0 0
        %330 = vmatpush2.bf16.msra.mxu0 0
        %331 = vmatprep.subr.bf16.mxu0 0
        %332 = vmatpush2.bf16.msra.mxu0 0
        %333 = vmatprep.subr.bf16.mxu0 0
        %334 = vmatpush2.bf16.msra.mxu0 0
        %335 = vmatprep.subr.bf16.mxu0 0
        %336 = vmatpush2.bf16.msra.mxu0 0
        %337 = vmatprep.subr.bf16.mxu0 0
        %338 = vmatpush2.bf16.msra.mxu0 0
        %339 = vmatprep.subr.bf16.mxu0 0
        %340 = vmatpush2.bf16.msra.mxu0 0
        %341 = vmatprep.subr.bf16.mxu0 0
        %342 = vmatpush2.bf16.msra.mxu0 0
        %343 = vmatprep.subr.bf16.mxu0 0
        %344 = vmatpush2.bf16.msra.mxu0 0
        %345 = vmatprep.mubr.bf16.mxu0 0
        %346 = vmatmul.mubr.bf16.gmra.mxu0 %v311
        %v347 = vpop.f32.mrf.mxu0
        %v348 = vadd.f32 %v295, %v347
        %v349 = vpop.f32.mrf.mxu0
        %v350 = vpop.f32.mrf.mxu0
        %v351 = vpop.f32.mrf.mxu0
        %352 = vdwg.mxu0
        %353 = vrot.lane.b32.xlu0 %v305, 96
        %v354 = vpop.permute.xlu0 %353
        %355 = vrot.lane.b32.xlu0 %v306, 96
        %v356 = vpop.permute.xlu0 %355
        %359 = vrot.lane.b32.xlu0 %v295, 96
        %v360 = vpop.permute.xlu0 %359
        %v363 = vsel %vm309, %v285, 0
        %365 = vmatprep.subr.bf16.mxu0 0
        %366 = vmatpush1.bf16.msra.mxu0 0
        %367 = vmatprep.subr.bf16.mxu0 0
        %368 = vmatpush1.bf16.msra.mxu0 0
        %369 = vmatprep.subr.bf16.mxu0 0
        %370 = vmatpush1.bf16.msra.mxu0 0
        %371 = vmatprep.subr.bf16.mxu0 0
        %372 = vmatpush1.bf16.msra.mxu0 0
        %373 = vmatprep.subr.bf16.mxu0 0
        %374 = vmatpush1.bf16.msra.mxu0 0
        %375 = vmatprep.subr.bf16.mxu0 0
        %376 = vmatpush1.bf16.msra.mxu0 0
        %377 = vmatprep.subr.bf16.mxu0 0
        %378 = vmatpush1.bf16.msra.mxu0 %v356
        %379 = vmatprep.subr.bf16.mxu0 0
        %380 = vmatpush1.bf16.msra.mxu0 %v354
        %381 = vmatprep.subr.bf16.mxu0 0
        %382 = vmatpush2.bf16.msra.mxu0 0
        %383 = vmatprep.subr.bf16.mxu0 0
        %384 = vmatpush2.bf16.msra.mxu0 0
        %385 = vmatprep.subr.bf16.mxu0 0
        %386 = vmatpush2.bf16.msra.mxu0 0
        %387 = vmatprep.subr.bf16.mxu0 0
        %388 = vmatpush2.bf16.msra.mxu0 0
        %389 = vmatprep.subr.bf16.mxu0 0
        %390 = vmatpush2.bf16.msra.mxu0 0
        %391 = vmatprep.subr.bf16.mxu0 0
        %392 = vmatpush2.bf16.msra.mxu0 0
        %393 = vmatprep.subr.bf16.mxu0 0
        %394 = vmatpush2.bf16.msra.mxu0 0
        %395 = vmatprep.subr.bf16.mxu0 0
        %396 = vmatpush2.bf16.msra.mxu0 0
        %397 = vmatprep.mubr.bf16.mxu0 0
        %398 = vmatmul.mubr.bf16.gmra.mxu0 %v363
        %v399 = vpop.f32.mrf.mxu0
        %v400 = vadd.f32 %v360, %v399
        %v401 = vpop.f32.mrf.mxu0
        %v402 = vpop.f32.mrf.mxu0
        %v403 = vpop.f32.mrf.mxu0
        %404 = vdwg.mxu0
        %v405 = vmul.f32 %v348, 0.35355338
        %407 = vrot.lane.b32.xlu0 %v405, 120
        %v408 = vpop.permute.xlu0 %407
        %410 = vrot.lane.b32.xlu0 %v405, 112
        %v411 = vpop.permute.xlu0 %410
        %413 = vrot.lane.b32.xlu0 %v405, 104
        %v414 = vpop.permute.xlu0 %413
        %v416 = vcombine.low %v405, %v411
        %v417 = vcombine.high %v405, %v411
        %v419 = vunpack.c.l.s4 1983009808
        %v420 = vunpack.c.0.s8 %v419
        %v421 = vlaneseq
        %v422 = vshrl.u32 %v421, 7
        %v423 = vsub.s32 %v420, %v422
        %v424 = vrot.slane %v416, %v423
        %v426 = vunpack.c.l.s4 1983009808
        %v427 = vunpack.c.0.s8 %v426
        %v428 = vlaneseq
        %v429 = vshrl.u32 %v428, 7
        %v430 = vsub.s32 %v427, %v429
        %v431 = vrot.slane %v417, %v430
        %v432 = vcombine.low %v408, %v414
        %v433 = vcombine.high %v408, %v414
        %v435 = vunpack.c.l.s4 1983009808
        %v436 = vunpack.c.0.s8 %v435
        %v437 = vlaneseq
        %v438 = vshrl.u32 %v437, 7
        %v439 = vsub.s32 %v436, %v438
        %v440 = vrot.slane %v432, %v439
        %v442 = vunpack.c.l.s4 1983009808
        %v443 = vunpack.c.0.s8 %v442
        %v444 = vlaneseq
        %v445 = vshrl.u32 %v444, 7
        %v446 = vsub.s32 %v443, %v445
        %v447 = vrot.slane %v433, %v446
        %v448 = vcombine.low %v424, %v440
        %v449 = vcombine.high %v424, %v440
        %v451 = vunpack.c.l.s4 1934713408
        %v452 = vunpack.c.0.s8 %v451
        %v453 = vlaneseq
        %v454 = vshrl.u32 %v453, 7
        %v455 = vsub.s32 %v452, %v454
        %v456 = vrot.slane %v448, %v455
        %v458 = vunpack.c.l.s4 1934713408
        %v459 = vunpack.c.0.s8 %v458
        %v460 = vlaneseq
        %v461 = vshrl.u32 %v460, 7
        %v462 = vsub.s32 %v459, %v461
        %v463 = vrot.slane %v449, %v462
        %v464 = vcombine.low %v431, %v447
        %v465 = vcombine.high %v431, %v447
        %v467 = vunpack.c.l.s4 1934713408
        %v468 = vunpack.c.0.s8 %v467
        %v469 = vlaneseq
        %v470 = vshrl.u32 %v469, 7
        %v471 = vsub.s32 %v468, %v470
        %v472 = vrot.slane %v464, %v471
        %v474 = vunpack.c.l.s4 1934713408
        %v475 = vunpack.c.0.s8 %v474
        %v476 = vlaneseq
        %v477 = vshrl.u32 %v476, 7
        %v478 = vsub.s32 %v475, %v477
        %v479 = vrot.slane %v465, %v478
        %v480 = vcombine.high %v456, 0.0
        %v481 = vcombine.high %v463, 0.0
        %v482 = vcombine.high %v472, 0.0
        %v483 = vcombine.high %v479, 0.0
        %v484 = vcombine.low %v456, %v463
        %v486 = vunpack.c.l.s4 1983009808
        %v487 = vunpack.c.0.s8 %v486
        %v488 = vlaneseq
        %v489 = vshrl.u32 %v488, 7
        %v490 = vsub.s32 %v487, %v489
        %v491 = vrot.slane %v484, %v490
        %v492 = vcombine.low %v480, %v481
        %v494 = vunpack.c.l.s4 1983009808
        %v495 = vunpack.c.0.s8 %v494
        %v496 = vlaneseq
        %v497 = vshrl.u32 %v496, 7
        %v498 = vsub.s32 %v495, %v497
        %v499 = vrot.slane %v492, %v498
        %v500 = vcombine.low %v472, %v479
        %v502 = vunpack.c.l.s4 1983009808
        %v503 = vunpack.c.0.s8 %v502
        %v504 = vlaneseq
        %v505 = vshrl.u32 %v504, 7
        %v506 = vsub.s32 %v503, %v505
        %v507 = vrot.slane %v500, %v506
        %v508 = vcombine.low %v482, %v483
        %v510 = vunpack.c.l.s4 1983009808
        %v511 = vunpack.c.0.s8 %v510
        %v512 = vlaneseq
        %v513 = vshrl.u32 %v512, 7
        %v514 = vsub.s32 %v511, %v513
        %v515 = vrot.slane %v508, %v514
        %v516 = vcombine.low %v491, %v499
        %v517 = vcombine.high %v491, %v499
        %v519 = vunpack.c.l.s4 1934713408
        %v520 = vunpack.c.0.s8 %v519
        %v521 = vlaneseq
        %v522 = vshrl.u32 %v521, 7
        %v523 = vsub.s32 %v520, %v522
        %v524 = vrot.slane %v516, %v523
        %v526 = vunpack.c.l.s4 1934713408
        %v527 = vunpack.c.0.s8 %v526
        %v528 = vlaneseq
        %v529 = vshrl.u32 %v528, 7
        %v530 = vsub.s32 %v527, %v529
        %v531 = vrot.slane %v517, %v530
        %v532 = vcombine.low %v507, %v515
        %v533 = vcombine.high %v507, %v515
        %v535 = vunpack.c.l.s4 1934713408
        %v536 = vunpack.c.0.s8 %v535
        %v537 = vlaneseq
        %v538 = vshrl.u32 %v537, 7
        %v539 = vsub.s32 %v536, %v538
        %v540 = vrot.slane %v532, %v539
        %v542 = vunpack.c.l.s4 1934713408
        %v543 = vunpack.c.0.s8 %v542
        %v544 = vlaneseq
        %v545 = vshrl.u32 %v544, 7
        %v546 = vsub.s32 %v543, %v545
        %v547 = vrot.slane %v533, %v546
        %v548 = vcombine.low %v524, %v540
        %v549 = vcombine.high %v524, %v540
        %v550 = vcombine.low %v531, %v547
        %v551 = vcombine.high %v531, %v547
        %v552 = vpack.c.bf16 %v548, %v548
        %v553 = vpack.c.bf16 %v549, %v549
        %v554 = vpack.c.bf16 %v550, %v550
        %v555 = vpack.c.bf16 %v551, %v551
        %557 = vrot.lane.b32.xlu0 %v400, 120
        %v558 = vpop.permute.xlu0 %557
        %560 = vrot.lane.b32.xlu0 %v400, 112
        %v561 = vpop.permute.xlu0 %560
        %563 = vrot.lane.b32.xlu0 %v400, 104
        %v564 = vpop.permute.xlu0 %563
        %v566 = vcombine.low %v400, %v561
        %v567 = vcombine.high %v400, %v561
        %v569 = vunpack.c.l.s4 1983009808
        %v570 = vunpack.c.0.s8 %v569
        %v571 = vlaneseq
        %v572 = vshrl.u32 %v571, 7
        %v573 = vsub.s32 %v570, %v572
        %v574 = vrot.slane %v566, %v573
        %v576 = vunpack.c.l.s4 1983009808
        %v577 = vunpack.c.0.s8 %v576
        %v578 = vlaneseq
        %v579 = vshrl.u32 %v578, 7
        %v580 = vsub.s32 %v577, %v579
        %v581 = vrot.slane %v567, %v580
        %v582 = vcombine.low %v558, %v564
        %v583 = vcombine.high %v558, %v564
        %v585 = vunpack.c.l.s4 1983009808
        %v586 = vunpack.c.0.s8 %v585
        %v587 = vlaneseq
        %v588 = vshrl.u32 %v587, 7
        %v589 = vsub.s32 %v586, %v588
        %v590 = vrot.slane %v582, %v589
        %v592 = vunpack.c.l.s4 1983009808
        %v593 = vunpack.c.0.s8 %v592
        %v594 = vlaneseq
        %v595 = vshrl.u32 %v594, 7
        %v596 = vsub.s32 %v593, %v595
        %v597 = vrot.slane %v583, %v596
        %v598 = vcombine.low %v574, %v590
        %v599 = vcombine.high %v574, %v590
        %v601 = vunpack.c.l.s4 1934713408
        %v602 = vunpack.c.0.s8 %v601
        %v603 = vlaneseq
        %v604 = vshrl.u32 %v603, 7
        %v605 = vsub.s32 %v602, %v604
        %v606 = vrot.slane %v598, %v605
        %v608 = vunpack.c.l.s4 1934713408
        %v609 = vunpack.c.0.s8 %v608
        %v610 = vlaneseq
        %v611 = vshrl.u32 %v610, 7
        %v612 = vsub.s32 %v609, %v611
        %v613 = vrot.slane %v599, %v612
        %v614 = vcombine.low %v581, %v597
        %v615 = vcombine.high %v581, %v597
        %v617 = vunpack.c.l.s4 1934713408
        %v618 = vunpack.c.0.s8 %v617
        %v619 = vlaneseq
        %v620 = vshrl.u32 %v619, 7
        %v621 = vsub.s32 %v618, %v620
        %v622 = vrot.slane %v614, %v621
        %v624 = vunpack.c.l.s4 1934713408
        %v625 = vunpack.c.0.s8 %v624
        %v626 = vlaneseq
        %v627 = vshrl.u32 %v626, 7
        %v628 = vsub.s32 %v625, %v627
        %v629 = vrot.slane %v615, %v628
        %v630 = vcombine.high %v606, 0.0
        %v631 = vcombine.high %v613, 0.0
        %v632 = vcombine.high %v622, 0.0
        %v633 = vcombine.high %v629, 0.0
        %v634 = vcombine.low %v606, %v613
        %v636 = vunpack.c.l.s4 1983009808
        %v637 = vunpack.c.0.s8 %v636
        %v638 = vlaneseq
        %v639 = vshrl.u32 %v638, 7
        %v640 = vsub.s32 %v637, %v639
        %v641 = vrot.slane %v634, %v640
        %v642 = vcombine.low %v630, %v631
        %v644 = vunpack.c.l.s4 1983009808
        %v645 = vunpack.c.0.s8 %v644
        %v646 = vlaneseq
        %v647 = vshrl.u32 %v646, 7
        %v648 = vsub.s32 %v645, %v647
        %v649 = vrot.slane %v642, %v648
        %v650 = vcombine.low %v622, %v629
        %v652 = vunpack.c.l.s4 1983009808
        %v653 = vunpack.c.0.s8 %v652
        %v654 = vlaneseq
        %v655 = vshrl.u32 %v654, 7
        %v656 = vsub.s32 %v653, %v655
        %v657 = vrot.slane %v650, %v656
        %v658 = vcombine.low %v632, %v633
        %v660 = vunpack.c.l.s4 1983009808
        %v661 = vunpack.c.0.s8 %v660
        %v662 = vlaneseq
        %v663 = vshrl.u32 %v662, 7
        %v664 = vsub.s32 %v661, %v663
        %v665 = vrot.slane %v658, %v664
        %v666 = vcombine.low %v641, %v649
        %v667 = vcombine.high %v641, %v649
        %v669 = vunpack.c.l.s4 1934713408
        %v670 = vunpack.c.0.s8 %v669
        %v671 = vlaneseq
        %v672 = vshrl.u32 %v671, 7
        %v673 = vsub.s32 %v670, %v672
        %v674 = vrot.slane %v666, %v673
        %v676 = vunpack.c.l.s4 1934713408
        %v677 = vunpack.c.0.s8 %v676
        %v678 = vlaneseq
        %v679 = vshrl.u32 %v678, 7
        %v680 = vsub.s32 %v677, %v679
        %v681 = vrot.slane %v667, %v680
        %v682 = vcombine.low %v657, %v665
        %v683 = vcombine.high %v657, %v665
        %v685 = vunpack.c.l.s4 1934713408
        %v686 = vunpack.c.0.s8 %v685
        %v687 = vlaneseq
        %v688 = vshrl.u32 %v687, 7
        %v689 = vsub.s32 %v686, %v688
        %v690 = vrot.slane %v682, %v689
        %v692 = vunpack.c.l.s4 1934713408
        %v693 = vunpack.c.0.s8 %v692
        %v694 = vlaneseq
        %v695 = vshrl.u32 %v694, 7
        %v696 = vsub.s32 %v693, %v695
        %v697 = vrot.slane %v683, %v696
        %v698 = vcombine.low %v674, %v690
        %v699 = vcombine.high %v674, %v690
        %v700 = vcombine.low %v681, %v697
        %v701 = vcombine.high %v681, %v697
        %v702 = vpack.c.bf16 %v698, %v698
        %v703 = vpack.c.bf16 %v699, %v699
        %v704 = vpack.c.bf16 %v700, %v700
        %v705 = vpack.c.bf16 %v701, %v701
        %706 = vrot.lane.b32.xlu0 %v400, 96
        %v707 = vpop.permute.xlu0 %706
        %708 = vrot.lane.b32.xlu0 %v558, 96
        %v709 = vpop.permute.xlu0 %708
        %710 = vrot.lane.b32.xlu0 %v561, 96
        %v711 = vpop.permute.xlu0 %710
        %712 = vrot.lane.b32.xlu0 %v564, 96
        %v713 = vpop.permute.xlu0 %712
        %v718 = vcombine.low %v707, %v711
        %v719 = vcombine.high %v707, %v711
        %v721 = vunpack.c.l.s4 1983009808
        %v722 = vunpack.c.0.s8 %v721
        %v723 = vlaneseq
        %v724 = vshrl.u32 %v723, 7
        %v725 = vsub.s32 %v722, %v724
        %v726 = vrot.slane %v718, %v725
        %v728 = vunpack.c.l.s4 1983009808
        %v729 = vunpack.c.0.s8 %v728
        %v730 = vlaneseq
        %v731 = vshrl.u32 %v730, 7
        %v732 = vsub.s32 %v729, %v731
        %v733 = vrot.slane %v719, %v732
        %v734 = vcombine.low %v709, %v713
        %v735 = vcombine.high %v709, %v713
        %v737 = vunpack.c.l.s4 1983009808
        %v738 = vunpack.c.0.s8 %v737
        %v739 = vlaneseq
        %v740 = vshrl.u32 %v739, 7
        %v741 = vsub.s32 %v738, %v740
        %v742 = vrot.slane %v734, %v741
        %v744 = vunpack.c.l.s4 1983009808
        %v745 = vunpack.c.0.s8 %v744
        %v746 = vlaneseq
        %v747 = vshrl.u32 %v746, 7
        %v748 = vsub.s32 %v745, %v747
        %v749 = vrot.slane %v735, %v748
        %v750 = vcombine.low %v726, %v742
        %v751 = vcombine.high %v726, %v742
        %v753 = vunpack.c.l.s4 1934713408
        %v754 = vunpack.c.0.s8 %v753
        %v755 = vlaneseq
        %v756 = vshrl.u32 %v755, 7
        %v757 = vsub.s32 %v754, %v756
        %v758 = vrot.slane %v750, %v757
        %v760 = vunpack.c.l.s4 1934713408
        %v761 = vunpack.c.0.s8 %v760
        %v762 = vlaneseq
        %v763 = vshrl.u32 %v762, 7
        %v764 = vsub.s32 %v761, %v763
        %v765 = vrot.slane %v751, %v764
        %v766 = vcombine.low %v733, %v749
        %v767 = vcombine.high %v733, %v749
        %v769 = vunpack.c.l.s4 1934713408
        %v770 = vunpack.c.0.s8 %v769
        %v771 = vlaneseq
        %v772 = vshrl.u32 %v771, 7
        %v773 = vsub.s32 %v770, %v772
        %v774 = vrot.slane %v766, %v773
        %v776 = vunpack.c.l.s4 1934713408
        %v777 = vunpack.c.0.s8 %v776
        %v778 = vlaneseq
        %v779 = vshrl.u32 %v778, 7
        %v780 = vsub.s32 %v777, %v779
        %v781 = vrot.slane %v767, %v780
        %v782 = vcombine.high %v758, 0.0
        %v783 = vcombine.high %v765, 0.0
        %v784 = vcombine.high %v774, 0.0
        %v785 = vcombine.high %v781, 0.0
        %v786 = vcombine.low %v758, %v765
        %v788 = vunpack.c.l.s4 1983009808
        %v789 = vunpack.c.0.s8 %v788
        %v790 = vlaneseq
        %v791 = vshrl.u32 %v790, 7
        %v792 = vsub.s32 %v789, %v791
        %v793 = vrot.slane %v786, %v792
        %v794 = vcombine.low %v782, %v783
        %v796 = vunpack.c.l.s4 1983009808
        %v797 = vunpack.c.0.s8 %v796
        %v798 = vlaneseq
        %v799 = vshrl.u32 %v798, 7
        %v800 = vsub.s32 %v797, %v799
        %v801 = vrot.slane %v794, %v800
        %v802 = vcombine.low %v774, %v781
        %v804 = vunpack.c.l.s4 1983009808
        %v805 = vunpack.c.0.s8 %v804
        %v806 = vlaneseq
        %v807 = vshrl.u32 %v806, 7
        %v808 = vsub.s32 %v805, %v807
        %v809 = vrot.slane %v802, %v808
        %v810 = vcombine.low %v784, %v785
        %v812 = vunpack.c.l.s4 1983009808
        %v813 = vunpack.c.0.s8 %v812
        %v814 = vlaneseq
        %v815 = vshrl.u32 %v814, 7
        %v816 = vsub.s32 %v813, %v815
        %v817 = vrot.slane %v810, %v816
        %v818 = vcombine.low %v793, %v801
        %v819 = vcombine.high %v793, %v801
        %v821 = vunpack.c.l.s4 1934713408
        %v822 = vunpack.c.0.s8 %v821
        %v823 = vlaneseq
        %v824 = vshrl.u32 %v823, 7
        %v825 = vsub.s32 %v822, %v824
        %v826 = vrot.slane %v818, %v825
        %v828 = vunpack.c.l.s4 1934713408
        %v829 = vunpack.c.0.s8 %v828
        %v830 = vlaneseq
        %v831 = vshrl.u32 %v830, 7
        %v832 = vsub.s32 %v829, %v831
        %v833 = vrot.slane %v819, %v832
        %v834 = vcombine.low %v809, %v817
        %v835 = vcombine.high %v809, %v817
        %v837 = vunpack.c.l.s4 1934713408
        %v838 = vunpack.c.0.s8 %v837
        %v839 = vlaneseq
        %v840 = vshrl.u32 %v839, 7
        %v841 = vsub.s32 %v838, %v840
        %v842 = vrot.slane %v834, %v841
        %v844 = vunpack.c.l.s4 1934713408
        %v845 = vunpack.c.0.s8 %v844
        %v846 = vlaneseq
        %v847 = vshrl.u32 %v846, 7
        %v848 = vsub.s32 %v845, %v847
        %v849 = vrot.slane %v835, %v848
        %v850 = vcombine.low %v826, %v842
        %v851 = vcombine.high %v826, %v842
        %v852 = vcombine.low %v833, %v849
        %v853 = vcombine.high %v833, %v849
        %v854 = vpack.c.bf16 %v850, %v850
        %v855 = vpack.c.bf16 %v851, %v851
        %v856 = vpack.c.bf16 %v852, %v852
        %v857 = vpack.c.bf16 %v853, %v853
        %vm858 = vcmask 64512
        %v860 = vsel %vm858, %v552, 0
        %v863 = vsel %vm858, %v702, 0
        %865 = vmatprep.subr.bf16.mxu0 0
        %866 = vmatpush1.bf16.xpose.msra.mxu0 0
        %867 = vmatprep.subr.bf16.mxu0 0
        %868 = vmatpush1.bf16.xpose.msra.mxu0 0
        %869 = vmatprep.subr.bf16.mxu0 0
        %870 = vmatpush1.bf16.xpose.msra.mxu0 0
        %871 = vmatprep.subr.bf16.mxu0 0
        %872 = vmatpush1.bf16.xpose.msra.mxu0 0
        %873 = vmatprep.subr.bf16.mxu0 0
        %874 = vmatpush1.bf16.xpose.msra.mxu0 0
        %875 = vmatprep.subr.bf16.mxu0 0
        %876 = vmatpush1.bf16.xpose.msra.mxu0 0
        %877 = vmatprep.subr.bf16.mxu0 0
        %878 = vmatpush1.bf16.xpose.msra.mxu0 0
        %879 = vmatprep.subr.bf16.mxu0 0
        %880 = vmatpush1.bf16.xpose.msra.mxu0 %v863
        %881 = vmatprep.subr.bf16.mxu0 0
        %882 = vmatpush2.bf16.xpose.msra.mxu0 0
        %883 = vmatprep.subr.bf16.mxu0 0
        %884 = vmatpush2.bf16.xpose.msra.mxu0 0
        %885 = vmatprep.subr.bf16.mxu0 0
        %886 = vmatpush2.bf16.xpose.msra.mxu0 0
        %887 = vmatprep.subr.bf16.mxu0 0
        %888 = vmatpush2.bf16.xpose.msra.mxu0 0
        %889 = vmatprep.subr.bf16.mxu0 0
        %890 = vmatpush2.bf16.xpose.msra.mxu0 0
        %891 = vmatprep.subr.bf16.mxu0 0
        %892 = vmatpush2.bf16.xpose.msra.mxu0 0
        %893 = vmatprep.subr.bf16.mxu0 0
        %894 = vmatpush2.bf16.xpose.msra.mxu0 0
        %895 = vmatprep.subr.bf16.mxu0 0
        %896 = vmatpush2.bf16.xpose.msra.mxu0 0
        %897 = vmatprep.mubr.bf16.mxu0 0
        %898 = vmatmul.mubr.bf16.gmra.mxu0 %v860
        %v899 = vpop.f32.mrf.mxu0
        %v900 = vadd.f32 0.0, %v899
        %v901 = vpop.f32.mrf.mxu0
        %v902 = vpop.f32.mrf.mxu0
        %v903 = vpop.f32.mrf.mxu0
        %904 = vdwg.mxu0
        %v906 = vsel %vm858, %v553, 0
        %v909 = vsel %vm858, %v703, 0
        %911 = vmatprep.subr.bf16.mxu0 0
        %912 = vmatpush1.bf16.xpose.msra.mxu0 0
        %913 = vmatprep.subr.bf16.mxu0 0
        %914 = vmatpush1.bf16.xpose.msra.mxu0 0
        %915 = vmatprep.subr.bf16.mxu0 0
        %916 = vmatpush1.bf16.xpose.msra.mxu0 0
        %917 = vmatprep.subr.bf16.mxu0 0
        %918 = vmatpush1.bf16.xpose.msra.mxu0 0
        %919 = vmatprep.subr.bf16.mxu0 0
        %920 = vmatpush1.bf16.xpose.msra.mxu0 0
        %921 = vmatprep.subr.bf16.mxu0 0
        %922 = vmatpush1.bf16.xpose.msra.mxu0 0
        %923 = vmatprep.subr.bf16.mxu0 0
        %924 = vmatpush1.bf16.xpose.msra.mxu0 0
        %925 = vmatprep.subr.bf16.mxu0 0
        %926 = vmatpush1.bf16.xpose.msra.mxu0 %v909
        %927 = vmatprep.subr.bf16.mxu0 0
        %928 = vmatpush2.bf16.xpose.msra.mxu0 0
        %929 = vmatprep.subr.bf16.mxu0 0
        %930 = vmatpush2.bf16.xpose.msra.mxu0 0
        %931 = vmatprep.subr.bf16.mxu0 0
        %932 = vmatpush2.bf16.xpose.msra.mxu0 0
        %933 = vmatprep.subr.bf16.mxu0 0
        %934 = vmatpush2.bf16.xpose.msra.mxu0 0
        %935 = vmatprep.subr.bf16.mxu0 0
        %936 = vmatpush2.bf16.xpose.msra.mxu0 0
        %937 = vmatprep.subr.bf16.mxu0 0
        %938 = vmatpush2.bf16.xpose.msra.mxu0 0
        %939 = vmatprep.subr.bf16.mxu0 0
        %940 = vmatpush2.bf16.xpose.msra.mxu0 0
        %941 = vmatprep.subr.bf16.mxu0 0
        %942 = vmatpush2.bf16.xpose.msra.mxu0 0
        %943 = vmatprep.mubr.bf16.mxu0 0
        %944 = vmatmul.mubr.bf16.gmra.mxu0 %v906
        %v945 = vpop.f32.mrf.mxu0
        %v946 = vadd.f32 0.0, %v945
        %v947 = vpop.f32.mrf.mxu0
        %v948 = vpop.f32.mrf.mxu0
        %v949 = vpop.f32.mrf.mxu0
        %950 = vdwg.mxu0
        %v952 = vsel %vm858, %v554, 0
        %v955 = vsel %vm858, %v704, 0
        %957 = vmatprep.subr.bf16.mxu0 0
        %958 = vmatpush1.bf16.xpose.msra.mxu0 0
        %959 = vmatprep.subr.bf16.mxu0 0
        %960 = vmatpush1.bf16.xpose.msra.mxu0 0
        %961 = vmatprep.subr.bf16.mxu0 0
        %962 = vmatpush1.bf16.xpose.msra.mxu0 0
        %963 = vmatprep.subr.bf16.mxu0 0
        %964 = vmatpush1.bf16.xpose.msra.mxu0 0
        %965 = vmatprep.subr.bf16.mxu0 0
        %966 = vmatpush1.bf16.xpose.msra.mxu0 0
        %967 = vmatprep.subr.bf16.mxu0 0
        %968 = vmatpush1.bf16.xpose.msra.mxu0 0
        %969 = vmatprep.subr.bf16.mxu0 0
        %970 = vmatpush1.bf16.xpose.msra.mxu0 0
        %971 = vmatprep.subr.bf16.mxu0 0
        %972 = vmatpush1.bf16.xpose.msra.mxu0 %v955
        %973 = vmatprep.subr.bf16.mxu0 0
        %974 = vmatpush2.bf16.xpose.msra.mxu0 0
        %975 = vmatprep.subr.bf16.mxu0 0
        %976 = vmatpush2.bf16.xpose.msra.mxu0 0
        %977 = vmatprep.subr.bf16.mxu0 0
        %978 = vmatpush2.bf16.xpose.msra.mxu0 0
        %979 = vmatprep.subr.bf16.mxu0 0
        %980 = vmatpush2.bf16.xpose.msra.mxu0 0
        %981 = vmatprep.subr.bf16.mxu0 0
        %982 = vmatpush2.bf16.xpose.msra.mxu0 0
        %983 = vmatprep.subr.bf16.mxu0 0
        %984 = vmatpush2.bf16.xpose.msra.mxu0 0
        %985 = vmatprep.subr.bf16.mxu0 0
        %986 = vmatpush2.bf16.xpose.msra.mxu0 0
        %987 = vmatprep.subr.bf16.mxu0 0
        %988 = vmatpush2.bf16.xpose.msra.mxu0 0
        %989 = vmatprep.mubr.bf16.mxu0 0
        %990 = vmatmul.mubr.bf16.gmra.mxu0 %v952
        %v991 = vpop.f32.mrf.mxu0
        %v992 = vadd.f32 0.0, %v991
        %v993 = vpop.f32.mrf.mxu0
        %v994 = vpop.f32.mrf.mxu0
        %v995 = vpop.f32.mrf.mxu0
        %996 = vdwg.mxu0
        %v998 = vsel %vm858, %v555, 0
        %v1001 = vsel %vm858, %v705, 0
        %1003 = vmatprep.subr.bf16.mxu0 0
        %1004 = vmatpush1.bf16.xpose.msra.mxu0 0
        %1005 = vmatprep.subr.bf16.mxu0 0
        %1006 = vmatpush1.bf16.xpose.msra.mxu0 0
        %1007 = vmatprep.subr.bf16.mxu0 0
        %1008 = vmatpush1.bf16.xpose.msra.mxu0 0
        %1009 = vmatprep.subr.bf16.mxu0 0
        %1010 = vmatpush1.bf16.xpose.msra.mxu0 0
        %1011 = vmatprep.subr.bf16.mxu0 0
        %1012 = vmatpush1.bf16.xpose.msra.mxu0 0
        %1013 = vmatprep.subr.bf16.mxu0 0
        %1014 = vmatpush1.bf16.xpose.msra.mxu0 0
        %1015 = vmatprep.subr.bf16.mxu0 0
        %1016 = vmatpush1.bf16.xpose.msra.mxu0 0
        %1017 = vmatprep.subr.bf16.mxu0 0
        %1018 = vmatpush1.bf16.xpose.msra.mxu0 %v1001
        %1019 = vmatprep.subr.bf16.mxu0 0
        %1020 = vmatpush2.bf16.xpose.msra.mxu0 0
        %1021 = vmatprep.subr.bf16.mxu0 0
        %1022 = vmatpush2.bf16.xpose.msra.mxu0 0
        %1023 = vmatprep.subr.bf16.mxu0 0
        %1024 = vmatpush2.bf16.xpose.msra.mxu0 0
        %1025 = vmatprep.subr.bf16.mxu0 0
        %1026 = vmatpush2.bf16.xpose.msra.mxu0 0
        %1027 = vmatprep.subr.bf16.mxu0 0
        %1028 = vmatpush2.bf16.xpose.msra.mxu0 0
        %1029 = vmatprep.subr.bf16.mxu0 0
        %1030 = vmatpush2.bf16.xpose.msra.mxu0 0
        %1031 = vmatprep.subr.bf16.mxu0 0
        %1032 = vmatpush2.bf16.xpose.msra.mxu0 0
        %1033 = vmatprep.subr.bf16.mxu0 0
        %1034 = vmatpush2.bf16.xpose.msra.mxu0 0
        %1035 = vmatprep.mubr.bf16.mxu0 0
        %1036 = vmatmul.mubr.bf16.gmra.mxu0 %v998
        %v1037 = vpop.f32.mrf.mxu0
        %v1038 = vadd.f32 0.0, %v1037
        %v1039 = vpop.f32.mrf.mxu0
        %v1040 = vpop.f32.mrf.mxu0
        %v1041 = vpop.f32.mrf.mxu0
        %1042 = vdwg.mxu0
        %v1043 = vsel %vm858, %v900, -inf
        %1044 = vmax.xlane.f32.xlu0 %v1043
        %v1045 = vpop.xlane.xlu0 %1044
        %v1046 = vsel %vm858, %v946, -inf
        %1047 = vmax.xlane.f32.xlu0 %v1046
        %v1048 = vpop.xlane.xlu0 %1047
        %v1049 = vsel %vm858, %v992, -inf
        %1050 = vmax.xlane.f32.xlu0 %v1049
        %v1051 = vpop.xlane.xlu0 %1050
        %v1052 = vsel %vm858, %v1038, -inf
        %1053 = vmax.xlane.f32.xlu0 %v1052
        %v1054 = vpop.xlane.xlu0 %1053
        %v1055 = vsub.f32 %v900, %v1045
        %v1056 = vsub.f32 %v946, %v1048
        %v1057 = vsub.f32 %v992, %v1051
        %v1058 = vsub.f32 %v1038, %v1054
        %v1059 = vmul.f32 %v1055, 1.442695
        %v1060 = vpow.pop %v1059
        %v1061 = vmul.f32 %v1056, 1.442695
        %v1062 = vpow.pop %v1061
        %v1063 = vmul.f32 %v1057, 1.442695
        %v1064 = vpow.pop %v1063
        %v1065 = vmul.f32 %v1058, 1.442695
        %v1066 = vpow.pop %v1065
        %v1067 = vsel %vm858, %v1060, 0.0
        %1068 = vadd.xlane.f32.xlu0 %v1067
        %v1069 = vpop.xlane.xlu0 %1068
        %v1070 = vsel %vm858, %v1062, 0.0
        %1071 = vadd.xlane.f32.xlu0 %v1070
        %v1072 = vpop.xlane.xlu0 %1071
        %v1073 = vsel %vm858, %v1064, 0.0
        %1074 = vadd.xlane.f32.xlu0 %v1073
        %v1075 = vpop.xlane.xlu0 %1074
        %v1076 = vsel %vm858, %v1066, 0.0
        %1077 = vadd.xlane.f32.xlu0 %v1076
        %v1078 = vpop.xlane.xlu0 %1077
        %v1079 = vrcp.pop %v1069
        %v1080 = vrcp.pop %v1072
        %v1081 = vrcp.pop %v1075
        %v1082 = vrcp.pop %v1078
        %v1083 = vmul.f32 %v1060, %v1079
        %v1084 = vmul.f32 %v1062, %v1080
        %v1085 = vmul.f32 %v1064, %v1081
        %v1086 = vmul.f32 %v1066, %v1082
        %v1087 = vpack.c.bf16 %v1083, %v1083
        %v1088 = vpack.c.bf16 %v1084, %v1084
        %v1089 = vpack.c.bf16 %v1085, %v1085
        %v1090 = vpack.c.bf16 %v1086, %v1086
        %v1092 = vsel %vm858, %v1087, 0
        %vm1094 = vcmask 1043456
        %v1096 = vsel %vm1094, %v854, 0
        %1098 = vmatprep.subr.bf16.mxu0 0
        %1099 = vmatpush1.bf16.msra.mxu0 0
        %1100 = vmatprep.subr.bf16.mxu0 0
        %1101 = vmatpush1.bf16.msra.mxu0 0
        %1102 = vmatprep.subr.bf16.mxu0 0
        %1103 = vmatpush1.bf16.msra.mxu0 0
        %1104 = vmatprep.subr.bf16.mxu0 0
        %1105 = vmatpush1.bf16.msra.mxu0 0
        %1106 = vmatprep.subr.bf16.mxu0 0
        %1107 = vmatpush1.bf16.msra.mxu0 0
        %1108 = vmatprep.subr.bf16.mxu0 0
        %1109 = vmatpush1.bf16.msra.mxu0 0
        %1110 = vmatprep.subr.bf16.mxu0 0
        %1111 = vmatpush1.bf16.msra.mxu0 0
        %1112 = vmatprep.subr.bf16.mxu0 0
        %1113 = vmatpush1.bf16.msra.mxu0 %v1096
        %1114 = vmatprep.subr.bf16.mxu0 0
        %1115 = vmatpush2.bf16.msra.mxu0 0
        %1116 = vmatprep.subr.bf16.mxu0 0
        %1117 = vmatpush2.bf16.msra.mxu0 0
        %1118 = vmatprep.subr.bf16.mxu0 0
        %1119 = vmatpush2.bf16.msra.mxu0 0
        %1120 = vmatprep.subr.bf16.mxu0 0
        %1121 = vmatpush2.bf16.msra.mxu0 0
        %1122 = vmatprep.subr.bf16.mxu0 0
        %1123 = vmatpush2.bf16.msra.mxu0 0
        %1124 = vmatprep.subr.bf16.mxu0 0
        %1125 = vmatpush2.bf16.msra.mxu0 0
        %1126 = vmatprep.subr.bf16.mxu0 0
        %1127 = vmatpush2.bf16.msra.mxu0 0
        %1128 = vmatprep.subr.bf16.mxu0 0
        %1129 = vmatpush2.bf16.msra.mxu0 0
        %1130 = vmatprep.mubr.bf16.mxu0 0
        %1131 = vmatmul.mubr.bf16.gmra.mxu0 %v1092
        %v1132 = vpop.f32.mrf.mxu0
        %v1133 = vadd.f32 0.0, %v1132
        %v1134 = vpop.f32.mrf.mxu0
        %v1135 = vpop.f32.mrf.mxu0
        %v1136 = vpop.f32.mrf.mxu0
        %1137 = vdwg.mxu0
        %v1139 = vsel %vm858, %v1088, 0
        %v1142 = vsel %vm1094, %v855, 0
        %1144 = vmatprep.subr.bf16.mxu0 0
        %1145 = vmatpush1.bf16.msra.mxu0 0
        %1146 = vmatprep.subr.bf16.mxu0 0
        %1147 = vmatpush1.bf16.msra.mxu0 0
        %1148 = vmatprep.subr.bf16.mxu0 0
        %1149 = vmatpush1.bf16.msra.mxu0 0
        %1150 = vmatprep.subr.bf16.mxu0 0
        %1151 = vmatpush1.bf16.msra.mxu0 0
        %1152 = vmatprep.subr.bf16.mxu0 0
        %1153 = vmatpush1.bf16.msra.mxu0 0
        %1154 = vmatprep.subr.bf16.mxu0 0
        %1155 = vmatpush1.bf16.msra.mxu0 0
        %1156 = vmatprep.subr.bf16.mxu0 0
        %1157 = vmatpush1.bf16.msra.mxu0 0
        %1158 = vmatprep.subr.bf16.mxu0 0
        %1159 = vmatpush1.bf16.msra.mxu0 %v1142
        %1160 = vmatprep.subr.bf16.mxu0 0
        %1161 = vmatpush2.bf16.msra.mxu0 0
        %1162 = vmatprep.subr.bf16.mxu0 0
        %1163 = vmatpush2.bf16.msra.mxu0 0
        %1164 = vmatprep.subr.bf16.mxu0 0
        %1165 = vmatpush2.bf16.msra.mxu0 0
        %1166 = vmatprep.subr.bf16.mxu0 0
        %1167 = vmatpush2.bf16.msra.mxu0 0
        %1168 = vmatprep.subr.bf16.mxu0 0
        %1169 = vmatpush2.bf16.msra.mxu0 0
        %1170 = vmatprep.subr.bf16.mxu0 0
        %1171 = vmatpush2.bf16.msra.mxu0 0
        %1172 = vmatprep.subr.bf16.mxu0 0
        %1173 = vmatpush2.bf16.msra.mxu0 0
        %1174 = vmatprep.subr.bf16.mxu0 0
        %1175 = vmatpush2.bf16.msra.mxu0 0
        %1176 = vmatprep.mubr.bf16.mxu0 0
        %1177 = vmatmul.mubr.bf16.gmra.mxu0 %v1139
        %v1178 = vpop.f32.mrf.mxu0
        %v1179 = vadd.f32 0.0, %v1178
        %v1180 = vpop.f32.mrf.mxu0
        %v1181 = vpop.f32.mrf.mxu0
        %v1182 = vpop.f32.mrf.mxu0
        %1183 = vdwg.mxu0
        %v1185 = vsel %vm858, %v1089, 0
        %v1188 = vsel %vm1094, %v856, 0
        %1190 = vmatprep.subr.bf16.mxu0 0
        %1191 = vmatpush1.bf16.msra.mxu0 0
        %1192 = vmatprep.subr.bf16.mxu0 0
        %1193 = vmatpush1.bf16.msra.mxu0 0
        %1194 = vmatprep.subr.bf16.mxu0 0
        %1195 = vmatpush1.bf16.msra.mxu0 0
        %1196 = vmatprep.subr.bf16.mxu0 0
        %1197 = vmatpush1.bf16.msra.mxu0 0
        %1198 = vmatprep.subr.bf16.mxu0 0
        %1199 = vmatpush1.bf16.msra.mxu0 0
        %1200 = vmatprep.subr.bf16.mxu0 0
        %1201 = vmatpush1.bf16.msra.mxu0 0
        %1202 = vmatprep.subr.bf16.mxu0 0
        %1203 = vmatpush1.bf16.msra.mxu0 0
        %1204 = vmatprep.subr.bf16.mxu0 0
        %1205 = vmatpush1.bf16.msra.mxu0 %v1188
        %1206 = vmatprep.subr.bf16.mxu0 0
        %1207 = vmatpush2.bf16.msra.mxu0 0
        %1208 = vmatprep.subr.bf16.mxu0 0
        %1209 = vmatpush2.bf16.msra.mxu0 0
        %1210 = vmatprep.subr.bf16.mxu0 0
        %1211 = vmatpush2.bf16.msra.mxu0 0
        %1212 = vmatprep.subr.bf16.mxu0 0
        %1213 = vmatpush2.bf16.msra.mxu0 0
        %1214 = vmatprep.subr.bf16.mxu0 0
        %1215 = vmatpush2.bf16.msra.mxu0 0
        %1216 = vmatprep.subr.bf16.mxu0 0
        %1217 = vmatpush2.bf16.msra.mxu0 0
        %1218 = vmatprep.subr.bf16.mxu0 0
        %1219 = vmatpush2.bf16.msra.mxu0 0
        %1220 = vmatprep.subr.bf16.mxu0 0
        %1221 = vmatpush2.bf16.msra.mxu0 0
        %1222 = vmatprep.mubr.bf16.mxu0 0
        %1223 = vmatmul.mubr.bf16.gmra.mxu0 %v1185
        %v1224 = vpop.f32.mrf.mxu0
        %v1225 = vadd.f32 0.0, %v1224
        %v1226 = vpop.f32.mrf.mxu0
        %v1227 = vpop.f32.mrf.mxu0
        %v1228 = vpop.f32.mrf.mxu0
        %1229 = vdwg.mxu0
        %v1231 = vsel %vm858, %v1090, 0
        %v1234 = vsel %vm1094, %v857, 0
        %1236 = vmatprep.subr.bf16.mxu0 0
        %1237 = vmatpush1.bf16.msra.mxu0 0
        %1238 = vmatprep.subr.bf16.mxu0 0
        %1239 = vmatpush1.bf16.msra.mxu0 0
        %1240 = vmatprep.subr.bf16.mxu0 0
        %1241 = vmatpush1.bf16.msra.mxu0 0
        %1242 = vmatprep.subr.bf16.mxu0 0
        %1243 = vmatpush1.bf16.msra.mxu0 0
        %1244 = vmatprep.subr.bf16.mxu0 0
        %1245 = vmatpush1.bf16.msra.mxu0 0
        %1246 = vmatprep.subr.bf16.mxu0 0
        %1247 = vmatpush1.bf16.msra.mxu0 0
        %1248 = vmatprep.subr.bf16.mxu0 0
        %1249 = vmatpush1.bf16.msra.mxu0 0
        %1250 = vmatprep.subr.bf16.mxu0 0
        %1251 = vmatpush1.bf16.msra.mxu0 %v1234
        %1252 = vmatprep.subr.bf16.mxu0 0
        %1253 = vmatpush2.bf16.msra.mxu0 0
        %1254 = vmatprep.subr.bf16.mxu0 0
        %1255 = vmatpush2.bf16.msra.mxu0 0
        %1256 = vmatprep.subr.bf16.mxu0 0
        %1257 = vmatpush2.bf16.msra.mxu0 0
        %1258 = vmatprep.subr.bf16.mxu0 0
        %1259 = vmatpush2.bf16.msra.mxu0 0
        %1260 = vmatprep.subr.bf16.mxu0 0
        %1261 = vmatpush2.bf16.msra.mxu0 0
        %1262 = vmatprep.subr.bf16.mxu0 0
        %1263 = vmatpush2.bf16.msra.mxu0 0
        %1264 = vmatprep.subr.bf16.mxu0 0
        %1265 = vmatpush2.bf16.msra.mxu0 0
        %1266 = vmatprep.subr.bf16.mxu0 0
        %1267 = vmatpush2.bf16.msra.mxu0 0
        %1268 = vmatprep.mubr.bf16.mxu0 0
        %1269 = vmatmul.mubr.bf16.gmra.mxu0 %v1231
        %v1270 = vpop.f32.mrf.mxu0
        %v1271 = vadd.f32 0.0, %v1270
        %v1272 = vpop.f32.mrf.mxu0
        %v1273 = vpop.f32.mrf.mxu0
        %v1274 = vpop.f32.mrf.mxu0
        %1275 = vdwg.mxu0
        %v1276 = vcombine.low %v1133, %v1225
        %v1277 = vcombine.high %v1133, %v1225
        %v1279 = vunpack.c.l.s4 1983009808
        %v1280 = vunpack.c.0.s8 %v1279
        %v1281 = vlaneseq
        %v1282 = vshrl.u32 %v1281, 7
        %v1283 = vsub.s32 %v1280, %v1282
        %v1284 = vrot.slane %v1276, %v1283
        %v1286 = vunpack.c.l.s4 1983009808
        %v1287 = vunpack.c.0.s8 %v1286
        %v1288 = vlaneseq
        %v1289 = vshrl.u32 %v1288, 7
        %v1290 = vsub.s32 %v1287, %v1289
        %v1291 = vrot.slane %v1277, %v1290
        %v1292 = vcombine.low %v1179, %v1271
        %v1293 = vcombine.high %v1179, %v1271
        %v1295 = vunpack.c.l.s4 1983009808
        %v1296 = vunpack.c.0.s8 %v1295
        %v1297 = vlaneseq
        %v1298 = vshrl.u32 %v1297, 7
        %v1299 = vsub.s32 %v1296, %v1298
        %v1300 = vrot.slane %v1292, %v1299
        %v1302 = vunpack.c.l.s4 1983009808
        %v1303 = vunpack.c.0.s8 %v1302
        %v1304 = vlaneseq
        %v1305 = vshrl.u32 %v1304, 7
        %v1306 = vsub.s32 %v1303, %v1305
        %v1307 = vrot.slane %v1293, %v1306
        %v1308 = vcombine.low %v1284, %v1300
        %v1309 = vcombine.high %v1284, %v1300
        %v1311 = vunpack.c.l.s4 1934713408
        %v1312 = vunpack.c.0.s8 %v1311
        %v1313 = vlaneseq
        %v1314 = vshrl.u32 %v1313, 7
        %v1315 = vsub.s32 %v1312, %v1314
        %v1316 = vrot.slane %v1308, %v1315
        %v1318 = vunpack.c.l.s4 1934713408
        %v1319 = vunpack.c.0.s8 %v1318
        %v1320 = vlaneseq
        %v1321 = vshrl.u32 %v1320, 7
        %v1322 = vsub.s32 %v1319, %v1321
        %v1323 = vrot.slane %v1309, %v1322
        %v1324 = vcombine.low %v1291, %v1307
        %v1325 = vcombine.high %v1291, %v1307
        %v1327 = vunpack.c.l.s4 1934713408
        %v1328 = vunpack.c.0.s8 %v1327
        %v1329 = vlaneseq
        %v1330 = vshrl.u32 %v1329, 7
        %v1331 = vsub.s32 %v1328, %v1330
        %v1332 = vrot.slane %v1324, %v1331
        %v1334 = vunpack.c.l.s4 1934713408
        %v1335 = vunpack.c.0.s8 %v1334
        %v1336 = vlaneseq
        %v1337 = vshrl.u32 %v1336, 7
        %v1338 = vsub.s32 %v1335, %v1337
        %v1339 = vrot.slane %v1325, %v1338
        %v1340 = vcombine.high %v1316, 0.0
        %v1341 = vcombine.high %v1323, 0.0
        %v1342 = vcombine.high %v1332, 0.0
        %v1343 = vcombine.high %v1339, 0.0
        %v1344 = vcombine.low %v1316, %v1323
        %v1346 = vunpack.c.l.s4 1983009808
        %v1347 = vunpack.c.0.s8 %v1346
        %v1348 = vlaneseq
        %v1349 = vshrl.u32 %v1348, 7
        %v1350 = vsub.s32 %v1347, %v1349
        %v1351 = vrot.slane %v1344, %v1350
        %v1352 = vcombine.low %v1340, %v1341
        %v1354 = vunpack.c.l.s4 1983009808
        %v1355 = vunpack.c.0.s8 %v1354
        %v1356 = vlaneseq
        %v1357 = vshrl.u32 %v1356, 7
        %v1358 = vsub.s32 %v1355, %v1357
        %v1359 = vrot.slane %v1352, %v1358
        %v1360 = vcombine.low %v1332, %v1339
        %v1362 = vunpack.c.l.s4 1983009808
        %v1363 = vunpack.c.0.s8 %v1362
        %v1364 = vlaneseq
        %v1365 = vshrl.u32 %v1364, 7
        %v1366 = vsub.s32 %v1363, %v1365
        %v1367 = vrot.slane %v1360, %v1366
        %v1368 = vcombine.low %v1342, %v1343
        %v1370 = vunpack.c.l.s4 1983009808
        %v1371 = vunpack.c.0.s8 %v1370
        %v1372 = vlaneseq
        %v1373 = vshrl.u32 %v1372, 7
        %v1374 = vsub.s32 %v1371, %v1373
        %v1375 = vrot.slane %v1368, %v1374
        %v1376 = vcombine.low %v1351, %v1359
        %v1377 = vcombine.high %v1351, %v1359
        %v1379 = vunpack.c.l.s4 1934713408
        %v1380 = vunpack.c.0.s8 %v1379
        %v1381 = vlaneseq
        %v1382 = vshrl.u32 %v1381, 7
        %v1383 = vsub.s32 %v1380, %v1382
        %v1384 = vrot.slane %v1376, %v1383
        %v1386 = vunpack.c.l.s4 1934713408
        %v1387 = vunpack.c.0.s8 %v1386
        %v1388 = vlaneseq
        %v1389 = vshrl.u32 %v1388, 7
        %v1390 = vsub.s32 %v1387, %v1389
        %v1391 = vrot.slane %v1377, %v1390
        %v1392 = vcombine.low %v1367, %v1375
        %v1393 = vcombine.high %v1367, %v1375
        %v1395 = vunpack.c.l.s4 1934713408
        %v1396 = vunpack.c.0.s8 %v1395
        %v1397 = vlaneseq
        %v1398 = vshrl.u32 %v1397, 7
        %v1399 = vsub.s32 %v1396, %v1398
        %v1400 = vrot.slane %v1392, %v1399
        %v1402 = vunpack.c.l.s4 1934713408
        %v1403 = vunpack.c.0.s8 %v1402
        %v1404 = vlaneseq
        %v1405 = vshrl.u32 %v1404, 7
        %v1406 = vsub.s32 %v1403, %v1405
        %v1407 = vrot.slane %v1393, %v1406
        %v1408 = vcombine.low %v1384, %v1400
        %v1409 = vcombine.high %v1384, %v1400
        %v1410 = vcombine.low %v1391, %v1407
        %v1411 = vcombine.high %v1391, %v1407
        %1413 = vrot.lane.b32.xlu0 %v1409, 8
        %v1414 = vpop.permute.xlu0 %1413
        %1417 = vrot.lane.b32.xlu0 %v1410, 16
        %v1418 = vpop.permute.xlu0 %1417
        %1421 = vrot.lane.b32.xlu0 %v1411, 24
        %v1422 = vpop.permute.xlu0 %1421
        %v1424 = vsel %vm858, %v1408, %v1414
        %vm1425 = vcmask 130048
        %v1426 = vsel %vm1425, %v1424, %v1418
        %vm1427 = vcmask 195584
        %v1428 = vsel %vm1427, %v1426, %v1422
        %1429 = vst.msk [vmem:[%s280] sm:$0xff] %vm309, %v1428
        %s1430 = sand.u32 %s142, 1
        %s1431 = scalar_lea.sflag [#allocation4], %s1430
        %s1432 = sand.u32 %s142, 1
        %s1433 = smul.addr %s1432, 8
        %s1434 = scalar_lea.vmem [#allocation8], %s1433
        // Predicated region
        $region49: #{tpu_custom_call.1} parent=35 // pred_check
          %p1435 = pneg %p152
        $region50: #{tpu_custom_call.1} parent=35 // pred_check_branch
          %1437 = sbr.rel (%p1435) target = $region52
        $region51: #{tpu_custom_call.1} parent=35 // pred_region
          %s1439 = ssub.s32 128, 128
          %1440 = vsyncadd %s1431, %s1439
          %s1441 = sadd.s32 %s29, %s28
          %s1442 = smul.addr %s1441, 128
          %s1443 = scalar_lea.hbm %s4, %s1442
          %s1445 = sshll.u32 %s1434, 4
          %s1446 = int_to_ptr.vmem [resolvable:$true] %s1445
          %1448 = dma.vmem_to_hbm [thread:$0]  %s1446, 128, %s1443, %s1431
        $region52: #{tpu_custom_call.1} parent=35 // pred_fallthru
          _
      $region36: #{tpu_custom_call.1} parent=5 // pred_fallthru
        _
      %p1449 = scmp.le.s32.totalorder 2, %s19
      // Predicated region
      $region53: #{tpu_custom_call.1} parent=5 // pred_check
        %p1450 = pneg %p1449
      $region54: #{tpu_custom_call.1} parent=5 // pred_check_branch
        %1452 = sbr.rel (%p1450) target = $region56
      $region55: #{tpu_custom_call.1} parent=5 // pred_region
        %s1453 = ssub.s32 %s19, 2
        // Predicated region
        $region57: #{tpu_custom_call.1} parent=55 // pred_check
          %p1454 = pneg %p158
        $region58: #{tpu_custom_call.1} parent=55 // pred_check_branch
          %1456 = sbr.rel (%p1454) target = $region60
        $region59: #{tpu_custom_call.1} parent=55 // pred_region
          %s1457 = sand.u32 %s143, 1
          %s1458 = scalar_lea.sflag [#allocation4], %s1457
          %s1459 = sand.u32 %s143, 1
          %s1460 = smul.addr %s1459, 8
          %s1461 = scalar_lea.vmem [#allocation8], %s1460
          %1462 = dma.done %s1458, 128
        $region60: #{tpu_custom_call.1} parent=55 // pred_fallthru
          _
      $region56: #{tpu_custom_call.1} parent=5 // pred_fallthru
        _
    $region6: #{tpu_custom_call.1} parent=1 // loop_footer
      %s23 = sadd.s32 1, %s19
    $region7: #{tpu_custom_call.1} parent=1 // loop_footer_branch
      %18 = sbr.rel target = $region3
    $region8: #{tpu_custom_call.1} parent=1 // loop_exit
      _
    %1463 = vsyncpa [#allocation3], 1
    %s1464 = scalar_lea.sflag [#allocation3], 1
    %1465 = vsyncpa %s1464, 1
    %1466 = vsyncpa [#allocation6], 1
    %s1467 = scalar_lea.sflag [#allocation6], 1
    %1468 = vsyncpa %s1467, 1
    %1469 = vsyncpa [#allocation4], 1
    %s1470 = scalar_lea.sflag [#allocation4], 1
    %1471 = vsyncpa %s1470, 1

// kernel: tpu_custom_call.1
$region0: #{tpu_custom_call.1}
  #allocation0 [shape = 'u32[]', space=smem, size = 0x4, offset = 0x4, fixed_abs, tag = 'smem constant byte address 0x4 - core index']
  #allocation1 [shape = 'u32[144,128]{1,0:T(1,128)}', space=vmem, size = 0x12000, scoped, tag = 'internal scratch']
  %s0 = inlined_call_operand.hbm [shape: f32[2,8,32], index: 0, kind: input, shape index: {}]
  %s1 = inlined_call_operand.hbm [shape: f32[2,8,32], index: 1, kind: input, shape index: {}]
  %s2 = inlined_call_operand.hbm [shape: bf16[32,96], index: 2, kind: input, shape index: {}]
  %s3 = inlined_call_operand.vmem [shape: f32[1,96], index: 3, kind: input, shape index: {}]
  %s4 = inlined_call_operand.hbm [shape: f32[2,8,32], index: 4, kind: output, shape index: {}]
  %s5 = sld [smem:[#allocation0]]
  $region61: #{tpu_custom_call.1} parent=0
    _
  %s7 = ssub.s32 1, %s5
  %s8 = scalar_select 0, %s7, %s5
  $region1: #{tpu_custom_call.1} parent=0
    #allocation2 [shape = 'u8[8192]{0}', space=vmem, size = 0x2000, scoped, tag = 'input window, operand 0']
    #allocation3 [shape = 's32[2]{0}', space=sflag, size = 0x8, scoped, tag = 'scoped memory for tpu_custom_call.1']
    #allocation4 [shape = 's32[2]{0}', space=sflag, size = 0x8, scoped, tag = 'scoped memory for tpu_custom_call.1']
    #allocation5 [shape = 'u8[8192]{0}', space=vmem, size = 0x2000, scoped, tag = 'input window, operand 1']
    #allocation6 [shape = 's32[2]{0}', space=sflag, size = 0x8, scoped, tag = 'scoped memory for tpu_custom_call.1']
    #allocation7 [shape = 'u8[8192]{0}', space=vmem, size = 0x2000, scoped, tag = 'input window, operand 2, single buffered']
    #allocation8 [shape = 'u8[8192]{0}', space=vmem, size = 0x2000, scoped, tag = 'output window, operand 0']
    %9 = vsyncpa [#allocation3], 0
    %s10 = scalar_lea.sflag [#allocation3], 1
    %11 = vsyncpa %s10, 0
    %12 = vsyncpa [#allocation6], 0
    %s13 = scalar_lea.sflag [#allocation6], 1
    %14 = vsyncpa %s13, 0
    %15 = vsyncpa [#allocation4], 0
    %s16 = scalar_lea.sflag [#allocation4], 1
    %17 = vsyncpa %s16, 0
    loop: start=0, step=1, limit=4
    $region2: #{tpu_custom_call.1} parent=1 // loop_pre_header
      _
    $region3: #{tpu_custom_call.1} parent=1 // loop_header
      %s19 = sphi 0, %s23
      %p20 = scmp.ge.s32.totalorder %s19, 4
      %s26 = sphi 0, %s38
      %s27 = sphi 0, %s34
      %s28 = sphi 0, %s26
      %s29 = sphi 0, %s27
      %s30 = sphi 0, %s28
      %s31 = sphi 0, %s29
      %s43 = sphi 0, %s45
      %s46 = sphi 0, %s43
      %s47 = sphi 0, %s46
      %s63 = sphi 0, %s47
      %s69 = sphi 0, %s71
      %s72 = sphi 0, %s69
      %s73 = sphi 0, %s72
      %s89 = sphi 0, %s73
      %s93 = sphi 0, %s93
      %s95 = sphi 0, %s93
      %s96 = sphi 0, %s95
      %s110 = sphi 0, %s96
      %s114 = sphi 0, %s114
      %s116 = sphi 0, %s114
      %s117 = sphi 0, %s116
      %s131 = sphi 0, %s117
      %s139 = sphi 0, %s141
      %s142 = sphi 0, %s139
      %s143 = sphi 0, %s142
      %s159 = sphi 0, %s143
    $region4: #{tpu_custom_call.1} parent=1 // loop_header_branch
      %22 = sbr.rel (%p20) target = $region8
    $region5: #{tpu_custom_call.1} parent=1 // loop_body
      %s24 = ssub.s32 %s19, 1
      %s25 = ssub.s32 %s19, 2
      %s32 = sadd.s32 1, %s27
      %p33 = scmp.ge.s32.totalorder %s32, 1
      %s34 = scalar_select %p33, 0, %s32
      %s35 = sadd.s32 1, %s26
      %s36 = scalar_select %p33, %s35, %s26
      %p37 = scmp.ge.s32.totalorder %s36, 2
      %s38 = scalar_select %p37, 0, %s36
      %s39 = ssub.s32 %s26, %s38
      %s40 = ssub.s32 %s27, %s34
      %s41 = sor.u32 %s39, %s40
      %p42 = scmp.eq.s32.totalorder %s41, 0
      %s44 = sadd.s32 %s43, 1
      %s45 = scalar_select %p42, %s43, %s44
      %p48 = pneg %p42
      %p49 = scmp.eq.s32.totalorder %s19, 1
      %p50 = por %p48, %p49
      %p51 = scmp.ne.s32.totalorder %s43, %s46
      %p52 = scmp.eq.s32.totalorder %s19, 0
      %p53 = por %p51, %p52
      %p54 = scmp.ne.s32.totalorder %s43, %s46
      %p55 = scmp.eq.s32.totalorder %s24, 1
      %p56 = por %p54, %p55
      %p57 = scmp.ne.s32.totalorder %s46, %s47
      %p58 = scmp.eq.s32.totalorder %s24, 0
      %p59 = por %p57, %p58
      %p60 = scmp.ne.s32.totalorder %s46, %s47
      %p61 = scmp.eq.s32.totalorder %s25, 1
      %p62 = por %p60, %p61
      %p64 = scmp.ne.s32.totalorder %s47, %s63
      %p65 = scmp.eq.s32.totalorder %s25, 0
      %p66 = por %p64, %p65
      %s67 = ssub.s32 %s26, %s38
      %p68 = scmp.eq.s32.totalorder %s67, 0
      %s70 = sadd.s32 %s69, 1
      %s71 = scalar_select %p68, %s69, %s70
      %p74 = pneg %p68
      %p75 = scmp.eq.s32.totalorder %s19, 1
      %p76 = por %p74, %p75
      %p77 = scmp.ne.s32.totalorder %s69, %s72
      %p78 = scmp.eq.s32.totalorder %s19, 0
      %p79 = por %p77, %p78
      %p80 = scmp.ne.s32.totalorder %s69, %s72
      %p81 = scmp.eq.s32.totalorder %s24, 1
      %p82 = por %p80, %p81
      %p83 = scmp.ne.s32.totalorder %s72, %s73
      %p84 = scmp.eq.s32.totalorder %s24, 0
      %p85 = por %p83, %p84
      %p86 = scmp.ne.s32.totalorder %s72, %s73
      %p87 = scmp.eq.s32.totalorder %s25, 1
      %p88 = por %p86, %p87
      %p90 = scmp.ne.s32.totalorder %s73, %s89
      %p91 = scmp.eq.s32.totalorder %s25, 0
      %p92 = por %p90, %p91
      %s94 = sadd.s32 %s93, 1
      %p97 = scmp.eq.s32.totalorder %s19, 1
      %p98 = scmp.ne.s32.totalorder %s93, %s95
      %p99 = scmp.eq.s32.totalorder %s19, 0
      %p100 = por %p98, %p99
      %p101 = scmp.ne.s32.totalorder %s93, %s95
      %p102 = scmp.eq.s32.totalorder %s24, 1
      %p103 = por %p101, %p102
      %p104 = scmp.ne.s32.totalorder %s95, %s96
      %p105 = scmp.eq.s32.totalorder %s24, 0
      %p106 = por %p104, %p105
      %p107 = scmp.ne.s32.totalorder %s95, %s96
      %p108 = scmp.eq.s32.totalorder %s25, 1
      %p109 = por %p107, %p108
      %p111 = scmp.ne.s32.totalorder %s96, %s110
      %p112 = scmp.eq.s32.totalorder %s25, 0
      %p113 = por %p111, %p112
      %s115 = sadd.s32 %s114, 1
      %p118 = scmp.eq.s32.totalorder %s19, 1
      %p119 = scmp.ne.s32.totalorder %s114, %s116
      %p120 = scmp.eq.s32.totalorder %s19, 0
      %p121 = por %p119, %p120
      %p122 = scmp.ne.s32.totalorder %s114, %s116
      %p123 = scmp.eq.s32.totalorder %s24, 1
      %p124 = por %p122, %p123
      %p125 = scmp.ne.s32.totalorder %s116, %s117
      %p126 = scmp.eq.s32.totalorder %s24, 0
      %p127 = por %p125, %p126
      %p128 = scmp.ne.s32.totalorder %s116, %s117
      %p129 = scmp.eq.s32.totalorder %s25, 1
      %p130 = por %p128, %p129
      %p132 = scmp.ne.s32.totalorder %s117, %s131
      %p133 = scmp.eq.s32.totalorder %s25, 0
      %p134 = por %p132, %p133
      %s135 = ssub.s32 %s26, %s38
      %s136 = ssub.s32 %s27, %s34
      %s137 = sor.u32 %s135, %s136
      %p138 = scmp.eq.s32.totalorder %s137, 0
      %s140 = sadd.s32 %s139, 1
      %s141 = scalar_select %p138, %s139, %s140
      %p144 = pneg %p138
      %p145 = scmp.eq.s32.totalorder %s19, 1
      %p146 = por %p144, %p145
      %p147 = scmp.ne.s32.totalorder %s139, %s142
      %p148 = scmp.eq.s32.totalorder %s19, 0
      %p149 = por %p147, %p148
      %p150 = scmp.ne.s32.totalorder %s139, %s142
      %p151 = scmp.eq.s32.totalorder %s24, 1
      %p152 = por %p150, %p151
      %p153 = scmp.ne.s32.totalorder %s142, %s143
      %p154 = scmp.eq.s32.totalorder %s24, 0
      %p155 = por %p153, %p154
      %p156 = scmp.ne.s32.totalorder %s142, %s143
      %p157 = scmp.eq.s32.totalorder %s25, 1
      %p158 = por %p156, %p157
      %p160 = scmp.ne.s32.totalorder %s143, %s159
      %p161 = scmp.eq.s32.totalorder %s25, 0
      %p162 = por %p160, %p161
      %p163 = scmp.le.s32.totalorder 1, %s19
      %p164 = scmp.lt.s32.totalorder %s19, 3
      %p165 = pnand %p163, %p164
      %p166 = pneg %p165
      // Predicated region
      $region9: #{tpu_custom_call.1} parent=5 // pred_check
        _
      $region10: #{tpu_custom_call.1} parent=5 // pred_check_branch
        %168 = sbr.rel (%p165) target = $region12
      $region11: #{tpu_custom_call.1} parent=5 // pred_region
        %s169 = ssub.s32 %s19, 1
        // Predicated region
        $region13: #{tpu_custom_call.1} parent=11 // pred_check
          %p170 = pneg %p106
        $region14: #{tpu_custom_call.1} parent=11 // pred_check_branch
          %172 = sbr.rel (%p170) target = $region16
        $region15: #{tpu_custom_call.1} parent=11 // pred_region
          %s174 = ssub.s32 256, 256
          %175 = vsyncadd [#allocation6], %s174
          %s176 = sshll.u32 [#allocation7], 4
          %s177 = int_to_ptr.vmem [resolvable:$true] %s176
          %182 = dma.hbm_to_vmem [thread:$0]  %s2, 256, %s177, [#allocation6], 64, 64, 4
        $region16: #{tpu_custom_call.1} parent=11 // pred_fallthru
          _
        // Predicated region
        $region17: #{tpu_custom_call.1} parent=11 // pred_check
          %p183 = pneg %p127
        $region18: #{tpu_custom_call.1} parent=11 // pred_check_branch
          %185 = sbr.rel (%p183) target = $region20
        $region19: #{tpu_custom_call.1} parent=11 // pred_region
          _
        $region20: #{tpu_custom_call.1} parent=11 // pred_fallthru
          _
      $region12: #{tpu_custom_call.1} parent=5 // pred_fallthru
        _
      %p186 = scmp.lt.s32.totalorder %s19, 2
      // Predicated region
      $region21: #{tpu_custom_call.1} parent=5 // pred_check
        %p187 = pneg %p186
      $region22: #{tpu_custom_call.1} parent=5 // pred_check_branch
        %189 = sbr.rel (%p187) target = $region24
      $region23: #{tpu_custom_call.1} parent=5 // pred_region
        // Predicated region
        $region25: #{tpu_custom_call.1} parent=23 // pred_check
          %p190 = pneg %p53
        $region26: #{tpu_custom_call.1} parent=23 // pred_check_branch
          %192 = sbr.rel (%p190) target = $region28
        $region27: #{tpu_custom_call.1} parent=23 // pred_region
          %s193 = sand.u32 %s43, 1
          %s194 = scalar_lea.sflag [#allocation3], %s193
          %s195 = sand.u32 %s43, 1
          %s196 = smul.addr %s195, 8
          %s197 = scalar_lea.vmem [#allocation2], %s196
          %s199 = ssub.s32 128, 128
          %200 = vsyncadd %s194, %s199
          %s201 = sadd.s32 %s27, %s26
          %s202 = smul.addr %s201, 128
          %s203 = scalar_lea.hbm %s0, %s202
          %s205 = sshll.u32 %s197, 4
          %s206 = int_to_ptr.vmem [resolvable:$true] %s205
          %208 = dma.hbm_to_vmem [thread:$0]  %s203, 128, %s206, %s194
        $region28: #{tpu_custom_call.1} parent=23 // pred_fallthru
          _
        // Predicated region
        $region29: #{tpu_custom_call.1} parent=23 // pred_check
          %p209 = pneg %p79
        $region30: #{tpu_custom_call.1} parent=23 // pred_check_branch
          %211 = sbr.rel (%p209) target = $region32
        $region31: #{tpu_custom_call.1} parent=23 // pred_region
          %s212 = sand.u32 %s19, 1
          %s213 = scalar_lea.sflag [#allocation6], %s212
          %s214 = sand.u32 %s69, 1
          %s215 = smul.addr %s214, 8
          %s216 = scalar_lea.vmem [#allocation5], %s215
          %s218 = ssub.s32 128, 128
          %219 = vsyncadd %s213, %s218
          %s220 = smul.addr %s26, 128
          %s221 = scalar_lea.hbm %s1, %s220
          %s223 = sshll.u32 %s216, 4
          %s224 = int_to_ptr.vmem [resolvable:$true] %s223
          %226 = dma.hbm_to_vmem [thread:$0]  %s221, 128, %s224, %s213
        $region32: #{tpu_custom_call.1} parent=23 // pred_fallthru
          _
      $region24: #{tpu_custom_call.1} parent=5 // pred_fallthru
        _
      %p227 = scmp.le.s32.totalorder 1, %s19
      %p228 = scmp.lt.s32.totalorder %s19, 3
      %p229 = pnand %p227, %p228
      %p230 = pneg %p229
      // Predicated region
      $region33: #{tpu_custom_call.1} parent=5 // pred_check
        _
      $region34: #{tpu_custom_call.1} parent=5 // pred_check_branch
        %232 = sbr.rel (%p229) target = $region36
      $region35: #{tpu_custom_call.1} parent=5 // pred_region
        %s233 = ssub.s32 %s19, 1
        %s234 = sand.u32 %s46, 1
        %s235 = scalar_lea.sflag [#allocation3], %s234
        %s236 = sand.u32 %s46, 1
        %s237 = smul.addr %s236, 8
        %s238 = scalar_lea.vmem [#allocation2], %s237
        // Predicated region
        $region37: #{tpu_custom_call.1} parent=35 // pred_check
          %p239 = pneg %p59
        $region38: #{tpu_custom_call.1} parent=35 // pred_check_branch
          %241 = sbr.rel (%p239) target = $region40
        $region39: #{tpu_custom_call.1} parent=35 // pred_region
          %242 = dma.done %s235, 128
        $region40: #{tpu_custom_call.1} parent=35 // pred_fallthru
          _
        %s243 = sand.u32 %s24, 1
        %s244 = scalar_lea.sflag [#allocation6], %s243
        %s245 = sand.u32 %s72, 1
        %s246 = smul.addr %s245, 8
        %s247 = scalar_lea.vmem [#allocation5], %s246
        // Predicated region
        $region41: #{tpu_custom_call.1} parent=35 // pred_check
          %p248 = pneg %p85
        $region42: #{tpu_custom_call.1} parent=35 // pred_check_branch
          %250 = sbr.rel (%p248) target = $region44
        $region43: #{tpu_custom_call.1} parent=35 // pred_region
          %251 = dma.done %s244, 128
        $region44: #{tpu_custom_call.1} parent=35 // pred_fallthru
          _
        // Predicated region
        $region45: #{tpu_custom_call.1} parent=35 // pred_check
          %p252 = pneg %p106
        $region46: #{tpu_custom_call.1} parent=35 // pred_check_branch
          %254 = sbr.rel (%p252) target = $region48
        $region47: #{tpu_custom_call.1} parent=35 // pred_region
          %255 = dma.done [#allocation6], 256
        $region48: #{tpu_custom_call.1} parent=35 // pred_fallthru
          _
        %s256 = sand.u32 %s46, 1
        %s257 = scalar_lea.sflag [#allocation3], %s256
        %s258 = sand.u32 %s46, 1
        %s259 = smul.addr %s258, 8
        %s260 = scalar_lea.vmem [#allocation2], %s259
        %p261 = pneg %p59
        %p262 = pneg %p56
        %s263 = sand.u32 %s24, 1
        %s264 = scalar_lea.sflag [#allocation6], %s263
        %s265 = sand.u32 %s72, 1
        %s266 = smul.addr %s265, 8
        %s267 = scalar_lea.vmem [#allocation5], %s266
        %p268 = pneg %p85
        %p269 = pneg %p82
        %p270 = pneg %p106
        %p271 = pneg %p103
        %p272 = pneg %p127
        %p273 = pneg %p124
        %p274 = pneg %p155
        %p275 = pneg %p152
        %s276 = sand.u32 %s142, 1
        %s277 = scalar_lea.sflag [#allocation4], %s276
        %s278 = sand.u32 %s142, 1
        %s279 = smul.addr %s278, 8
        %s280 = scalar_lea.vmem [#allocation8], %s279
        %v282 = vld [vmem:[%s238] sm:$0xff]
        %v283 = vpack.c.bf16 %v282, %v282
        %v284 = vld [vmem:[%s247] sm:$0xff]
        %v285 = vpack.c.bf16 %v284, %v284
        %v286 = vld [vmem:[#allocation7] sm:$0xf]
        %v287 = vld [vmem:[#allocation7 + $0x4] sm:$0xf]
        %v288 = vld [vmem:[#allocation7 + $0x8] sm:$0xf]
        %v289 = vld [vmem:[#allocation7 + $0xc] sm:$0xf]
        %v290 = vld [vmem:[%s3] sm:$0x1]
        %v292 = vlaneseq
        %v293 = vshrl.u32 %v292, 7
        %v294 = vsub.s32 0, %v293
        %v295 = vrot.slane %v290, %v294
        %v301 = vunpack.c.l.b16 %v286
        %v302 = vunpack.c.l.b16 %v287
        %v303 = vunpack.c.l.b16 %v288
        %v304 = vunpack.c.l.b16 %v289
        %v305 = vpack.c.b16 %v302, %v301
        %v306 = vpack.c.b16 %v304, %v303
        %vm309 = vcmask 261120
        %v311 = vsel %vm309, %v283, 0
        %313 = vmatprep.subr.bf16.mxu0 0
        %314 = vmatpush1.bf16.msra.mxu0 0
        %315 = vmatprep.subr.bf16.mxu0 0
        %316 = vmatpush1.bf16.msra.mxu0 0
        %317 = vmatprep.subr.bf16.mxu0 0
        %318 = vmatpush1.bf16.msra.mxu0 0
        %319 = vmatprep.subr.bf16.mxu0 0
        %320 = vmatpush1.bf16.msra.mxu0 0
        %321 = vmatprep.subr.bf16.mxu0 0
        %322 = vmatpush1.bf16.msra.mxu0 0
        %323 = vmatprep.subr.bf16.mxu0 0
        %324 = vmatpush1.bf16.msra.mxu0 0
        %325 = vmatprep.subr.bf16.mxu0 0
        %326 = vmatpush1.bf16.msra.mxu0 %v306
        %327 = vmatprep.subr.bf16.mxu0 0
        %328 = vmatpush1.bf16.msra.mxu0 %v305
        %329 = vmatprep.subr.bf16.mxu0 0
        %330 = vmatpush2.bf16.msra.mxu0 0
        %331 = vmatprep.subr.bf16.mxu0 0
        %332 = vmatpush2.bf16.msra.mxu0 0
        %333 = vmatprep.subr.bf16.mxu0 0
        %334 = vmatpush2.bf16.msra.mxu0 0
        %335 = vmatprep.subr.bf16.mxu0 0
        %336 = vmatpush2.bf16.msra.mxu0 0
        %337 = vmatprep.subr.bf16.mxu0 0
        %338 = vmatpush2.bf16.msra.mxu0 0
        %339 = vmatprep.subr.bf16.mxu0 0
        %340 = vmatpush2.bf16.msra.mxu0 0
        %341 = vmatprep.subr.bf16.mxu0 0
        %342 = vmatpush2.bf16.msra.mxu0 0
        %343 = vmatprep.subr.bf16.mxu0 0
        %344 = vmatpush2.bf16.msra.mxu0 0
        %345 = vmatprep.mubr.bf16.mxu0 0
        %346 = vmatmul.mubr.bf16.gmra.mxu0 %v311
        %v347 = vpop.f32.mrf.mxu0
        %v348 = vadd.f32 %v295, %v347
        %v349 = vpop.f32.mrf.mxu0
        %v350 = vpop.f32.mrf.mxu0
        %v351 = vpop.f32.mrf.mxu0
        %352 = vdwg.mxu0
        %353 = vrot.lane.b32.xlu0 %v305, 96
        %v354 = vpop.permute.xlu0 %353
        %355 = vrot.lane.b32.xlu0 %v306, 96
        %v356 = vpop.permute.xlu0 %355
        %359 = vrot.lane.b32.xlu0 %v295, 96
        %v360 = vpop.permute.xlu0 %359
        %v363 = vsel %vm309, %v285, 0
        %365 = vmatprep.subr.bf16.mxu0 0
        %366 = vmatpush1.bf16.msra.mxu0 0
        %367 = vmatprep.subr.bf16.mxu0 0
        %368 = vmatpush1.bf16.msra.mxu0 0
        %369 = vmatprep.subr.bf16.mxu0 0
        %370 = vmatpush1.bf16.msra.mxu0 0
        %371 = vmatprep.subr.bf16.mxu0 0
        %372 = vmatpush1.bf16.msra.mxu0 0
        %373 = vmatprep.subr.bf16.mxu0 0
        %374 = vmatpush1.bf16.msra.mxu0 0
        %375 = vmatprep.subr.bf16.mxu0 0
        %376 = vmatpush1.bf16.msra.mxu0 0
        %377 = vmatprep.subr.bf16.mxu0 0
        %378 = vmatpush1.bf16.msra.mxu0 %v356
        %379 = vmatprep.subr.bf16.mxu0 0
        %380 = vmatpush1.bf16.msra.mxu0 %v354
        %381 = vmatprep.subr.bf16.mxu0 0
        %382 = vmatpush2.bf16.msra.mxu0 0
        %383 = vmatprep.subr.bf16.mxu0 0
        %384 = vmatpush2.bf16.msra.mxu0 0
        %385 = vmatprep.subr.bf16.mxu0 0
        %386 = vmatpush2.bf16.msra.mxu0 0
        %387 = vmatprep.subr.bf16.mxu0 0
        %388 = vmatpush2.bf16.msra.mxu0 0
        %389 = vmatprep.subr.bf16.mxu0 0
        %390 = vmatpush2.bf16.msra.mxu0 0
        %391 = vmatprep.subr.bf16.mxu0 0
        %392 = vmatpush2.bf16.msra.mxu0 0
        %393 = vmatprep.subr.bf16.mxu0 0
        %394 = vmatpush2.bf16.msra.mxu0 0
        %395 = vmatprep.subr.bf16.mxu0 0
        %396 = vmatpush2.bf16.msra.mxu0 0
        %397 = vmatprep.mubr.bf16.mxu0 0
        %398 = vmatmul.mubr.bf16.gmra.mxu0 %v363
        %v399 = vpop.f32.mrf.mxu0
        %v400 = vadd.f32 %v360, %v399
        %v401 = vpop.f32.mrf.mxu0
        %v402 = vpop.f32.mrf.mxu0
        %v403 = vpop.f32.mrf.mxu0
        %404 = vdwg.mxu0
        %v405 = vmul.f32 %v348, 0.35355338
        %vm406 = vcmask 64512
        %v408 = vsel %vm406, %v405, 0
        %v411 = vsel %vm406, %v400, 0
        %413 = vmatprep.subr.mxu0 0.0
        %414 = vmatpush1.xpose.msra.mxu0 0.0
        %415 = vmatprep.subr.mxu0 0.0
        %416 = vmatpush1.xpose.msra.mxu0 0.0
        %417 = vmatprep.subr.mxu0 0.0
        %418 = vmatpush1.xpose.msra.mxu0 0.0
        %419 = vmatprep.subr.mxu0 0.0
        %420 = vmatpush1.xpose.msra.mxu0 0.0
        %421 = vmatprep.subr.mxu0 0.0
        %422 = vmatpush1.xpose.msra.mxu0 0.0
        %423 = vmatprep.subr.mxu0 0.0
        %424 = vmatpush1.xpose.msra.mxu0 0.0
        %425 = vmatprep.subr.mxu0 0.0
        %426 = vmatpush1.xpose.msra.mxu0 0.0
        %427 = vmatprep.subr.mxu0 0.0
        %428 = vmatpush1.xpose.msra.mxu0 0.0
        %429 = vmatprep.subr.mxu0 0.0
        %430 = vmatpush1.xpose.msra.mxu0 0.0
        %431 = vmatprep.subr.mxu0 0.0
        %432 = vmatpush1.xpose.msra.mxu0 0.0
        %433 = vmatprep.subr.mxu0 0.0
        %434 = vmatpush1.xpose.msra.mxu0 0.0
        %435 = vmatprep.subr.mxu0 0.0
        %436 = vmatpush1.xpose.msra.mxu0 0.0
        %437 = vmatprep.subr.mxu0 0.0
        %438 = vmatpush1.xpose.msra.mxu0 0.0
        %439 = vmatprep.subr.mxu0 0.0
        %440 = vmatpush1.xpose.msra.mxu0 0.0
        %441 = vmatprep.subr.mxu0 0.0
        %442 = vmatpush1.xpose.msra.mxu0 0.0
        %443 = vmatprep.subr.mxu0 0.0
        %444 = vmatpush1.xpose.msra.mxu0 %v411
        %445 = vmatprep.subr.mxu0 0.0
        %446 = vmatpush2.xpose.msra.mxu0 0.0
        %447 = vmatprep.subr.mxu0 0.0
        %448 = vmatpush2.xpose.msra.mxu0 0.0
        %449 = vmatprep.subr.mxu0 0.0
        %450 = vmatpush2.xpose.msra.mxu0 0.0
        %451 = vmatprep.subr.mxu0 0.0
        %452 = vmatpush2.xpose.msra.mxu0 0.0
        %453 = vmatprep.subr.mxu0 0.0
        %454 = vmatpush2.xpose.msra.mxu0 0.0
        %455 = vmatprep.subr.mxu0 0.0
        %456 = vmatpush2.xpose.msra.mxu0 0.0
        %457 = vmatprep.subr.mxu0 0.0
        %458 = vmatpush2.xpose.msra.mxu0 0.0
        %459 = vmatprep.subr.mxu0 0.0
        %460 = vmatpush2.xpose.msra.mxu0 0.0
        %461 = vmatprep.subr.mxu0 0.0
        %462 = vmatpush2.xpose.msra.mxu0 0.0
        %463 = vmatprep.subr.mxu0 0.0
        %464 = vmatpush2.xpose.msra.mxu0 0.0
        %465 = vmatprep.subr.mxu0 0.0
        %466 = vmatpush2.xpose.msra.mxu0 0.0
        %467 = vmatprep.subr.mxu0 0.0
        %468 = vmatpush2.xpose.msra.mxu0 0.0
        %469 = vmatprep.subr.mxu0 0.0
        %470 = vmatpush2.xpose.msra.mxu0 0.0
        %471 = vmatprep.subr.mxu0 0.0
        %472 = vmatpush2.xpose.msra.mxu0 0.0
        %473 = vmatprep.subr.mxu0 0.0
        %474 = vmatpush2.xpose.msra.mxu0 0.0
        %475 = vmatprep.subr.mxu0 0.0
        %476 = vmatpush2.xpose.msra.mxu0 0.0
        %477 = vmatprep.mubr.f32.mxu0 0.0
        %478 = vmatmul.mubr.f32.gmra.mxu0 %v408
        %v479 = vpop.f32.mrf.mxu0
        %v480 = vadd.f32 0.0, %v479
        %v481 = vpop.f32.mrf.mxu0
        %482 = vdwg.mxu0
        %v483 = vsel %vm406, %v480, -inf
        %484 = vmax.xlane.f32.xlu0 %v483
        %v485 = vpop.xlane.xlu0 %484
        %v486 = vsub.f32 %v480, %v485
        %v487 = vmul.f32 %v486, 1.442695
        %v488 = vpow.pop %v487
        %v489 = vsel %vm406, %v488, 0.0
        %490 = vadd.xlane.f32.xlu0 %v489
        %v491 = vpop.xlane.xlu0 %490
        %v492 = vrcp.pop %v491
        %v493 = vmul.f32 %v488, %v492
        %494 = vrot.lane.b32.xlu0 %v400, 96
        %v495 = vpop.permute.xlu0 %494
        %v498 = vsel %vm406, %v493, 0
        %500 = vmatprep.subr.mxu0 0.0
        %501 = vmatpush1.msra.mxu0 0.0
        %502 = vmatprep.subr.mxu0 0.0
        %503 = vmatpush1.msra.mxu0 0.0
        %504 = vmatprep.subr.mxu0 0.0
        %505 = vmatpush1.msra.mxu0 0.0
        %506 = vmatprep.subr.mxu0 0.0
        %507 = vmatpush1.msra.mxu0 0.0
        %508 = vmatprep.subr.mxu0 0.0
        %509 = vmatpush1.msra.mxu0 0.0
        %510 = vmatprep.subr.mxu0 0.0
        %511 = vmatpush1.msra.mxu0 0.0
        %512 = vmatprep.subr.mxu0 0.0
        %513 = vmatpush1.msra.mxu0 0.0
        %514 = vmatprep.subr.mxu0 0.0
        %515 = vmatpush1.msra.mxu0 0.0
        %516 = vmatprep.subr.mxu0 0.0
        %517 = vmatpush1.msra.mxu0 0.0
        %518 = vmatprep.subr.mxu0 0.0
        %519 = vmatpush1.msra.mxu0 0.0
        %520 = vmatprep.subr.mxu0 0.0
        %521 = vmatpush1.msra.mxu0 0.0
        %522 = vmatprep.subr.mxu0 0.0
        %523 = vmatpush1.msra.mxu0 0.0
        %524 = vmatprep.subr.mxu0 0.0
        %525 = vmatpush1.msra.mxu0 0.0
        %526 = vmatprep.subr.mxu0 0.0
        %527 = vmatpush1.msra.mxu0 0.0
        %528 = vmatprep.subr.mxu0 0.0
        %529 = vmatpush1.msra.mxu0 0.0
        %530 = vmatprep.subr.mxu0 0.0
        %531 = vmatpush1.msra.mxu0 %v495
        %532 = vmatprep.subr.mxu0 0.0
        %533 = vmatpush2.msra.mxu0 0.0
        %534 = vmatprep.subr.mxu0 0.0
        %535 = vmatpush2.msra.mxu0 0.0
        %536 = vmatprep.subr.mxu0 0.0
        %537 = vmatpush2.msra.mxu0 0.0
        %538 = vmatprep.subr.mxu0 0.0
        %539 = vmatpush2.msra.mxu0 0.0
        %540 = vmatprep.subr.mxu0 0.0
        %541 = vmatpush2.msra.mxu0 0.0
        %542 = vmatprep.subr.mxu0 0.0
        %543 = vmatpush2.msra.mxu0 0.0
        %544 = vmatprep.subr.mxu0 0.0
        %545 = vmatpush2.msra.mxu0 0.0
        %546 = vmatprep.subr.mxu0 0.0
        %547 = vmatpush2.msra.mxu0 0.0
        %548 = vmatprep.subr.mxu0 0.0
        %549 = vmatpush2.msra.mxu0 0.0
        %550 = vmatprep.subr.mxu0 0.0
        %551 = vmatpush2.msra.mxu0 0.0
        %552 = vmatprep.subr.mxu0 0.0
        %553 = vmatpush2.msra.mxu0 0.0
        %554 = vmatprep.subr.mxu0 0.0
        %555 = vmatpush2.msra.mxu0 0.0
        %556 = vmatprep.subr.mxu0 0.0
        %557 = vmatpush2.msra.mxu0 0.0
        %558 = vmatprep.subr.mxu0 0.0
        %559 = vmatpush2.msra.mxu0 0.0
        %560 = vmatprep.subr.mxu0 0.0
        %561 = vmatpush2.msra.mxu0 0.0
        %562 = vmatprep.subr.mxu0 0.0
        %563 = vmatpush2.msra.mxu0 0.0
        %564 = vmatprep.mubr.f32.mxu0 0.0
        %565 = vmatmul.mubr.f32.gmra.mxu0 %v498
        %v566 = vpop.f32.mrf.mxu0
        %v567 = vadd.f32 0.0, %v566
        %v568 = vpop.f32.mrf.mxu0
        %569 = vdwg.mxu0
        %570 = vrot.lane.b32.xlu0 %v405, 120
        %v571 = vpop.permute.xlu0 %570
        %572 = vrot.lane.b32.xlu0 %v400, 120
        %v573 = vpop.permute.xlu0 %572
        %v574 = vsel %vm406, %v571, 0
        %v576 = vsel %vm406, %v573, 0
        %578 = vmatprep.subr.mxu0 0.0
        %579 = vmatpush1.xpose.msra.mxu0 0.0
        %580 = vmatprep.subr.mxu0 0.0
        %581 = vmatpush1.xpose.msra.mxu0 0.0
        %582 = vmatprep.subr.mxu0 0.0
        %583 = vmatpush1.xpose.msra.mxu0 0.0
        %584 = vmatprep.subr.mxu0 0.0
        %585 = vmatpush1.xpose.msra.mxu0 0.0
        %586 = vmatprep.subr.mxu0 0.0
        %587 = vmatpush1.xpose.msra.mxu0 0.0
        %588 = vmatprep.subr.mxu0 0.0
        %589 = vmatpush1.xpose.msra.mxu0 0.0
        %590 = vmatprep.subr.mxu0 0.0
        %591 = vmatpush1.xpose.msra.mxu0 0.0
        %592 = vmatprep.subr.mxu0 0.0
        %593 = vmatpush1.xpose.msra.mxu0 0.0
        %594 = vmatprep.subr.mxu0 0.0
        %595 = vmatpush1.xpose.msra.mxu0 0.0
        %596 = vmatprep.subr.mxu0 0.0
        %597 = vmatpush1.xpose.msra.mxu0 0.0
        %598 = vmatprep.subr.mxu0 0.0
        %599 = vmatpush1.xpose.msra.mxu0 0.0
        %600 = vmatprep.subr.mxu0 0.0
        %601 = vmatpush1.xpose.msra.mxu0 0.0
        %602 = vmatprep.subr.mxu0 0.0
        %603 = vmatpush1.xpose.msra.mxu0 0.0
        %604 = vmatprep.subr.mxu0 0.0
        %605 = vmatpush1.xpose.msra.mxu0 0.0
        %606 = vmatprep.subr.mxu0 0.0
        %607 = vmatpush1.xpose.msra.mxu0 0.0
        %608 = vmatprep.subr.mxu0 0.0
        %609 = vmatpush1.xpose.msra.mxu0 %v576
        %610 = vmatprep.subr.mxu0 0.0
        %611 = vmatpush2.xpose.msra.mxu0 0.0
        %612 = vmatprep.subr.mxu0 0.0
        %613 = vmatpush2.xpose.msra.mxu0 0.0
        %614 = vmatprep.subr.mxu0 0.0
        %615 = vmatpush2.xpose.msra.mxu0 0.0
        %616 = vmatprep.subr.mxu0 0.0
        %617 = vmatpush2.xpose.msra.mxu0 0.0
        %618 = vmatprep.subr.mxu0 0.0
        %619 = vmatpush2.xpose.msra.mxu0 0.0
        %620 = vmatprep.subr.mxu0 0.0
        %621 = vmatpush2.xpose.msra.mxu0 0.0
        %622 = vmatprep.subr.mxu0 0.0
        %623 = vmatpush2.xpose.msra.mxu0 0.0
        %624 = vmatprep.subr.mxu0 0.0
        %625 = vmatpush2.xpose.msra.mxu0 0.0
        %626 = vmatprep.subr.mxu0 0.0
        %627 = vmatpush2.xpose.msra.mxu0 0.0
        %628 = vmatprep.subr.mxu0 0.0
        %629 = vmatpush2.xpose.msra.mxu0 0.0
        %630 = vmatprep.subr.mxu0 0.0
        %631 = vmatpush2.xpose.msra.mxu0 0.0
        %632 = vmatprep.subr.mxu0 0.0
        %633 = vmatpush2.xpose.msra.mxu0 0.0
        %634 = vmatprep.subr.mxu0 0.0
        %635 = vmatpush2.xpose.msra.mxu0 0.0
        %636 = vmatprep.subr.mxu0 0.0
        %637 = vmatpush2.xpose.msra.mxu0 0.0
        %638 = vmatprep.subr.mxu0 0.0
        %639 = vmatpush2.xpose.msra.mxu0 0.0
        %640 = vmatprep.subr.mxu0 0.0
        %641 = vmatpush2.xpose.msra.mxu0 0.0
        %642 = vmatprep.mubr.f32.mxu0 0.0
        %643 = vmatmul.mubr.f32.gmra.mxu0 %v574
        %v644 = vpop.f32.mrf.mxu0
        %v645 = vadd.f32 0.0, %v644
        %v646 = vpop.f32.mrf.mxu0
        %647 = vdwg.mxu0
        %v648 = vsel %vm406, %v645, -inf
        %649 = vmax.xlane.f32.xlu0 %v648
        %v650 = vpop.xlane.xlu0 %649
        %v651 = vsub.f32 %v645, %v650
        %v652 = vmul.f32 %v651, 1.442695
        %v653 = vpow.pop %v652
        %v654 = vsel %vm406, %v653, 0.0
        %655 = vadd.xlane.f32.xlu0 %v654
        %v656 = vpop.xlane.xlu0 %655
        %v657 = vrcp.pop %v656
        %v658 = vmul.f32 %v653, %v657
        %659 = vrot.lane.b32.xlu0 %v400, 88
        %v660 = vpop.permute.xlu0 %659
        %v663 = vsel %vm406, %v658, 0
        %665 = vmatprep.subr.mxu0 0.0
        %666 = vmatpush1.msra.mxu0 0.0
        %667 = vmatprep.subr.mxu0 0.0
        %668 = vmatpush1.msra.mxu0 0.0
        %669 = vmatprep.subr.mxu0 0.0
        %670 = vmatpush1.msra.mxu0 0.0
        %671 = vmatprep.subr.mxu0 0.0
        %672 = vmatpush1.msra.mxu0 0.0
        %673 = vmatprep.subr.mxu0 0.0
        %674 = vmatpush1.msra.mxu0 0.0
        %675 = vmatprep.subr.mxu0 0.0
        %676 = vmatpush1.msra.mxu0 0.0
        %677 = vmatprep.subr.mxu0 0.0
        %678 = vmatpush1.msra.mxu0 0.0
        %679 = vmatprep.subr.mxu0 0.0
        %680 = vmatpush1.msra.mxu0 0.0
        %681 = vmatprep.subr.mxu0 0.0
        %682 = vmatpush1.msra.mxu0 0.0
        %683 = vmatprep.subr.mxu0 0.0
        %684 = vmatpush1.msra.mxu0 0.0
        %685 = vmatprep.subr.mxu0 0.0
        %686 = vmatpush1.msra.mxu0 0.0
        %687 = vmatprep.subr.mxu0 0.0
        %688 = vmatpush1.msra.mxu0 0.0
        %689 = vmatprep.subr.mxu0 0.0
        %690 = vmatpush1.msra.mxu0 0.0
        %691 = vmatprep.subr.mxu0 0.0
        %692 = vmatpush1.msra.mxu0 0.0
        %693 = vmatprep.subr.mxu0 0.0
        %694 = vmatpush1.msra.mxu0 0.0
        %695 = vmatprep.subr.mxu0 0.0
        %696 = vmatpush1.msra.mxu0 %v660
        %697 = vmatprep.subr.mxu0 0.0
        %698 = vmatpush2.msra.mxu0 0.0
        %699 = vmatprep.subr.mxu0 0.0
        %700 = vmatpush2.msra.mxu0 0.0
        %701 = vmatprep.subr.mxu0 0.0
        %702 = vmatpush2.msra.mxu0 0.0
        %703 = vmatprep.subr.mxu0 0.0
        %704 = vmatpush2.msra.mxu0 0.0
        %705 = vmatprep.subr.mxu0 0.0
        %706 = vmatpush2.msra.mxu0 0.0
        %707 = vmatprep.subr.mxu0 0.0
        %708 = vmatpush2.msra.mxu0 0.0
        %709 = vmatprep.subr.mxu0 0.0
        %710 = vmatpush2.msra.mxu0 0.0
        %711 = vmatprep.subr.mxu0 0.0
        %712 = vmatpush2.msra.mxu0 0.0
        %713 = vmatprep.subr.mxu0 0.0
        %714 = vmatpush2.msra.mxu0 0.0
        %715 = vmatprep.subr.mxu0 0.0
        %716 = vmatpush2.msra.mxu0 0.0
        %717 = vmatprep.subr.mxu0 0.0
        %718 = vmatpush2.msra.mxu0 0.0
        %719 = vmatprep.subr.mxu0 0.0
        %720 = vmatpush2.msra.mxu0 0.0
        %721 = vmatprep.subr.mxu0 0.0
        %722 = vmatpush2.msra.mxu0 0.0
        %723 = vmatprep.subr.mxu0 0.0
        %724 = vmatpush2.msra.mxu0 0.0
        %725 = vmatprep.subr.mxu0 0.0
        %726 = vmatpush2.msra.mxu0 0.0
        %727 = vmatprep.subr.mxu0 0.0
        %728 = vmatpush2.msra.mxu0 0.0
        %729 = vmatprep.mubr.f32.mxu0 0.0
        %730 = vmatmul.mubr.f32.gmra.mxu0 %v663
        %v731 = vpop.f32.mrf.mxu0
        %v732 = vadd.f32 0.0, %v731
        %v733 = vpop.f32.mrf.mxu0
        %734 = vdwg.mxu0
        %735 = vrot.lane.b32.xlu0 %v405, 112
        %v736 = vpop.permute.xlu0 %735
        %737 = vrot.lane.b32.xlu0 %v400, 112
        %v738 = vpop.permute.xlu0 %737
        %v739 = vsel %vm406, %v736, 0
        %v741 = vsel %vm406, %v738, 0
        %743 = vmatprep.subr.mxu0 0.0
        %744 = vmatpush1.xpose.msra.mxu0 0.0
        %745 = vmatprep.subr.mxu0 0.0
        %746 = vmatpush1.xpose.msra.mxu0 0.0
        %747 = vmatprep.subr.mxu0 0.0
        %748 = vmatpush1.xpose.msra.mxu0 0.0
        %749 = vmatprep.subr.mxu0 0.0
        %750 = vmatpush1.xpose.msra.mxu0 0.0
        %751 = vmatprep.subr.mxu0 0.0
        %752 = vmatpush1.xpose.msra.mxu0 0.0
        %753 = vmatprep.subr.mxu0 0.0
        %754 = vmatpush1.xpose.msra.mxu0 0.0
        %755 = vmatprep.subr.mxu0 0.0
        %756 = vmatpush1.xpose.msra.mxu0 0.0
        %757 = vmatprep.subr.mxu0 0.0
        %758 = vmatpush1.xpose.msra.mxu0 0.0
        %759 = vmatprep.subr.mxu0 0.0
        %760 = vmatpush1.xpose.msra.mxu0 0.0
        %761 = vmatprep.subr.mxu0 0.0
        %762 = vmatpush1.xpose.msra.mxu0 0.0
        %763 = vmatprep.subr.mxu0 0.0
        %764 = vmatpush1.xpose.msra.mxu0 0.0
        %765 = vmatprep.subr.mxu0 0.0
        %766 = vmatpush1.xpose.msra.mxu0 0.0
        %767 = vmatprep.subr.mxu0 0.0
        %768 = vmatpush1.xpose.msra.mxu0 0.0
        %769 = vmatprep.subr.mxu0 0.0
        %770 = vmatpush1.xpose.msra.mxu0 0.0
        %771 = vmatprep.subr.mxu0 0.0
        %772 = vmatpush1.xpose.msra.mxu0 0.0
        %773 = vmatprep.subr.mxu0 0.0
        %774 = vmatpush1.xpose.msra.mxu0 %v741
        %775 = vmatprep.subr.mxu0 0.0
        %776 = vmatpush2.xpose.msra.mxu0 0.0
        %777 = vmatprep.subr.mxu0 0.0
        %778 = vmatpush2.xpose.msra.mxu0 0.0
        %779 = vmatprep.subr.mxu0 0.0
        %780 = vmatpush2.xpose.msra.mxu0 0.0
        %781 = vmatprep.subr.mxu0 0.0
        %782 = vmatpush2.xpose.msra.mxu0 0.0
        %783 = vmatprep.subr.mxu0 0.0
        %784 = vmatpush2.xpose.msra.mxu0 0.0
        %785 = vmatprep.subr.mxu0 0.0
        %786 = vmatpush2.xpose.msra.mxu0 0.0
        %787 = vmatprep.subr.mxu0 0.0
        %788 = vmatpush2.xpose.msra.mxu0 0.0
        %789 = vmatprep.subr.mxu0 0.0
        %790 = vmatpush2.xpose.msra.mxu0 0.0
        %791 = vmatprep.subr.mxu0 0.0
        %792 = vmatpush2.xpose.msra.mxu0 0.0
        %793 = vmatprep.subr.mxu0 0.0
        %794 = vmatpush2.xpose.msra.mxu0 0.0
        %795 = vmatprep.subr.mxu0 0.0
        %796 = vmatpush2.xpose.msra.mxu0 0.0
        %797 = vmatprep.subr.mxu0 0.0
        %798 = vmatpush2.xpose.msra.mxu0 0.0
        %799 = vmatprep.subr.mxu0 0.0
        %800 = vmatpush2.xpose.msra.mxu0 0.0
        %801 = vmatprep.subr.mxu0 0.0
        %802 = vmatpush2.xpose.msra.mxu0 0.0
        %803 = vmatprep.subr.mxu0 0.0
        %804 = vmatpush2.xpose.msra.mxu0 0.0
        %805 = vmatprep.subr.mxu0 0.0
        %806 = vmatpush2.xpose.msra.mxu0 0.0
        %807 = vmatprep.mubr.f32.mxu0 0.0
        %808 = vmatmul.mubr.f32.gmra.mxu0 %v739
        %v809 = vpop.f32.mrf.mxu0
        %v810 = vadd.f32 0.0, %v809
        %v811 = vpop.f32.mrf.mxu0
        %812 = vdwg.mxu0
        %v813 = vsel %vm406, %v810, -inf
        %814 = vmax.xlane.f32.xlu0 %v813
        %v815 = vpop.xlane.xlu0 %814
        %v816 = vsub.f32 %v810, %v815
        %v817 = vmul.f32 %v816, 1.442695
        %v818 = vpow.pop %v817
        %v819 = vsel %vm406, %v818, 0.0
        %820 = vadd.xlane.f32.xlu0 %v819
        %v821 = vpop.xlane.xlu0 %820
        %v822 = vrcp.pop %v821
        %v823 = vmul.f32 %v818, %v822
        %824 = vrot.lane.b32.xlu0 %v400, 80
        %v825 = vpop.permute.xlu0 %824
        %v828 = vsel %vm406, %v823, 0
        %830 = vmatprep.subr.mxu0 0.0
        %831 = vmatpush1.msra.mxu0 0.0
        %832 = vmatprep.subr.mxu0 0.0
        %833 = vmatpush1.msra.mxu0 0.0
        %834 = vmatprep.subr.mxu0 0.0
        %835 = vmatpush1.msra.mxu0 0.0
        %836 = vmatprep.subr.mxu0 0.0
        %837 = vmatpush1.msra.mxu0 0.0
        %838 = vmatprep.subr.mxu0 0.0
        %839 = vmatpush1.msra.mxu0 0.0
        %840 = vmatprep.subr.mxu0 0.0
        %841 = vmatpush1.msra.mxu0 0.0
        %842 = vmatprep.subr.mxu0 0.0
        %843 = vmatpush1.msra.mxu0 0.0
        %844 = vmatprep.subr.mxu0 0.0
        %845 = vmatpush1.msra.mxu0 0.0
        %846 = vmatprep.subr.mxu0 0.0
        %847 = vmatpush1.msra.mxu0 0.0
        %848 = vmatprep.subr.mxu0 0.0
        %849 = vmatpush1.msra.mxu0 0.0
        %850 = vmatprep.subr.mxu0 0.0
        %851 = vmatpush1.msra.mxu0 0.0
        %852 = vmatprep.subr.mxu0 0.0
        %853 = vmatpush1.msra.mxu0 0.0
        %854 = vmatprep.subr.mxu0 0.0
        %855 = vmatpush1.msra.mxu0 0.0
        %856 = vmatprep.subr.mxu0 0.0
        %857 = vmatpush1.msra.mxu0 0.0
        %858 = vmatprep.subr.mxu0 0.0
        %859 = vmatpush1.msra.mxu0 0.0
        %860 = vmatprep.subr.mxu0 0.0
        %861 = vmatpush1.msra.mxu0 %v825
        %862 = vmatprep.subr.mxu0 0.0
        %863 = vmatpush2.msra.mxu0 0.0
        %864 = vmatprep.subr.mxu0 0.0
        %865 = vmatpush2.msra.mxu0 0.0
        %866 = vmatprep.subr.mxu0 0.0
        %867 = vmatpush2.msra.mxu0 0.0
        %868 = vmatprep.subr.mxu0 0.0
        %869 = vmatpush2.msra.mxu0 0.0
        %870 = vmatprep.subr.mxu0 0.0
        %871 = vmatpush2.msra.mxu0 0.0
        %872 = vmatprep.subr.mxu0 0.0
        %873 = vmatpush2.msra.mxu0 0.0
        %874 = vmatprep.subr.mxu0 0.0
        %875 = vmatpush2.msra.mxu0 0.0
        %876 = vmatprep.subr.mxu0 0.0
        %877 = vmatpush2.msra.mxu0 0.0
        %878 = vmatprep.subr.mxu0 0.0
        %879 = vmatpush2.msra.mxu0 0.0
        %880 = vmatprep.subr.mxu0 0.0
        %881 = vmatpush2.msra.mxu0 0.0
        %882 = vmatprep.subr.mxu0 0.0
        %883 = vmatpush2.msra.mxu0 0.0
        %884 = vmatprep.subr.mxu0 0.0
        %885 = vmatpush2.msra.mxu0 0.0
        %886 = vmatprep.subr.mxu0 0.0
        %887 = vmatpush2.msra.mxu0 0.0
        %888 = vmatprep.subr.mxu0 0.0
        %889 = vmatpush2.msra.mxu0 0.0
        %890 = vmatprep.subr.mxu0 0.0
        %891 = vmatpush2.msra.mxu0 0.0
        %892 = vmatprep.subr.mxu0 0.0
        %893 = vmatpush2.msra.mxu0 0.0
        %894 = vmatprep.mubr.f32.mxu0 0.0
        %895 = vmatmul.mubr.f32.gmra.mxu0 %v828
        %v896 = vpop.f32.mrf.mxu0
        %v897 = vadd.f32 0.0, %v896
        %v898 = vpop.f32.mrf.mxu0
        %899 = vdwg.mxu0
        %900 = vrot.lane.b32.xlu0 %v405, 104
        %v901 = vpop.permute.xlu0 %900
        %902 = vrot.lane.b32.xlu0 %v400, 104
        %v903 = vpop.permute.xlu0 %902
        %v904 = vsel %vm406, %v901, 0
        %v906 = vsel %vm406, %v903, 0
        %908 = vmatprep.subr.mxu0 0.0
        %909 = vmatpush1.xpose.msra.mxu0 0.0
        %910 = vmatprep.subr.mxu0 0.0
        %911 = vmatpush1.xpose.msra.mxu0 0.0
        %912 = vmatprep.subr.mxu0 0.0
        %913 = vmatpush1.xpose.msra.mxu0 0.0
        %914 = vmatprep.subr.mxu0 0.0
        %915 = vmatpush1.xpose.msra.mxu0 0.0
        %916 = vmatprep.subr.mxu0 0.0
        %917 = vmatpush1.xpose.msra.mxu0 0.0
        %918 = vmatprep.subr.mxu0 0.0
        %919 = vmatpush1.xpose.msra.mxu0 0.0
        %920 = vmatprep.subr.mxu0 0.0
        %921 = vmatpush1.xpose.msra.mxu0 0.0
        %922 = vmatprep.subr.mxu0 0.0
        %923 = vmatpush1.xpose.msra.mxu0 0.0
        %924 = vmatprep.subr.mxu0 0.0
        %925 = vmatpush1.xpose.msra.mxu0 0.0
        %926 = vmatprep.subr.mxu0 0.0
        %927 = vmatpush1.xpose.msra.mxu0 0.0
        %928 = vmatprep.subr.mxu0 0.0
        %929 = vmatpush1.xpose.msra.mxu0 0.0
        %930 = vmatprep.subr.mxu0 0.0
        %931 = vmatpush1.xpose.msra.mxu0 0.0
        %932 = vmatprep.subr.mxu0 0.0
        %933 = vmatpush1.xpose.msra.mxu0 0.0
        %934 = vmatprep.subr.mxu0 0.0
        %935 = vmatpush1.xpose.msra.mxu0 0.0
        %936 = vmatprep.subr.mxu0 0.0
        %937 = vmatpush1.xpose.msra.mxu0 0.0
        %938 = vmatprep.subr.mxu0 0.0
        %939 = vmatpush1.xpose.msra.mxu0 %v906
        %940 = vmatprep.subr.mxu0 0.0
        %941 = vmatpush2.xpose.msra.mxu0 0.0
        %942 = vmatprep.subr.mxu0 0.0
        %943 = vmatpush2.xpose.msra.mxu0 0.0
        %944 = vmatprep.subr.mxu0 0.0
        %945 = vmatpush2.xpose.msra.mxu0 0.0
        %946 = vmatprep.subr.mxu0 0.0
        %947 = vmatpush2.xpose.msra.mxu0 0.0
        %948 = vmatprep.subr.mxu0 0.0
        %949 = vmatpush2.xpose.msra.mxu0 0.0
        %950 = vmatprep.subr.mxu0 0.0
        %951 = vmatpush2.xpose.msra.mxu0 0.0
        %952 = vmatprep.subr.mxu0 0.0
        %953 = vmatpush2.xpose.msra.mxu0 0.0
        %954 = vmatprep.subr.mxu0 0.0
        %955 = vmatpush2.xpose.msra.mxu0 0.0
        %956 = vmatprep.subr.mxu0 0.0
        %957 = vmatpush2.xpose.msra.mxu0 0.0
        %958 = vmatprep.subr.mxu0 0.0
        %959 = vmatpush2.xpose.msra.mxu0 0.0
        %960 = vmatprep.subr.mxu0 0.0
        %961 = vmatpush2.xpose.msra.mxu0 0.0
        %962 = vmatprep.subr.mxu0 0.0
        %963 = vmatpush2.xpose.msra.mxu0 0.0
        %964 = vmatprep.subr.mxu0 0.0
        %965 = vmatpush2.xpose.msra.mxu0 0.0
        %966 = vmatprep.subr.mxu0 0.0
        %967 = vmatpush2.xpose.msra.mxu0 0.0
        %968 = vmatprep.subr.mxu0 0.0
        %969 = vmatpush2.xpose.msra.mxu0 0.0
        %970 = vmatprep.subr.mxu0 0.0
        %971 = vmatpush2.xpose.msra.mxu0 0.0
        %972 = vmatprep.mubr.f32.mxu0 0.0
        %973 = vmatmul.mubr.f32.gmra.mxu0 %v904
        %v974 = vpop.f32.mrf.mxu0
        %v975 = vadd.f32 0.0, %v974
        %v976 = vpop.f32.mrf.mxu0
        %977 = vdwg.mxu0
        %v978 = vsel %vm406, %v975, -inf
        %979 = vmax.xlane.f32.xlu0 %v978
        %v980 = vpop.xlane.xlu0 %979
        %v981 = vsub.f32 %v975, %v980
        %v982 = vmul.f32 %v981, 1.442695
        %v983 = vpow.pop %v982
        %v984 = vsel %vm406, %v983, 0.0
        %985 = vadd.xlane.f32.xlu0 %v984
        %v986 = vpop.xlane.xlu0 %985
        %v987 = vrcp.pop %v986
        %v988 = vmul.f32 %v983, %v987
        %989 = vrot.lane.b32.xlu0 %v400, 72
        %v990 = vpop.permute.xlu0 %989
        %v993 = vsel %vm406, %v988, 0
        %995 = vmatprep.subr.mxu0 0.0
        %996 = vmatpush1.msra.mxu0 0.0
        %997 = vmatprep.subr.mxu0 0.0
        %998 = vmatpush1.msra.mxu0 0.0
        %999 = vmatprep.subr.mxu0 0.0
        %1000 = vmatpush1.msra.mxu0 0.0
        %1001 = vmatprep.subr.mxu0 0.0
        %1002 = vmatpush1.msra.mxu0 0.0
        %1003 = vmatprep.subr.mxu0 0.0
        %1004 = vmatpush1.msra.mxu0 0.0
        %1005 = vmatprep.subr.mxu0 0.0
        %1006 = vmatpush1.msra.mxu0 0.0
        %1007 = vmatprep.subr.mxu0 0.0
        %1008 = vmatpush1.msra.mxu0 0.0
        %1009 = vmatprep.subr.mxu0 0.0
        %1010 = vmatpush1.msra.mxu0 0.0
        %1011 = vmatprep.subr.mxu0 0.0
        %1012 = vmatpush1.msra.mxu0 0.0
        %1013 = vmatprep.subr.mxu0 0.0
        %1014 = vmatpush1.msra.mxu0 0.0
        %1015 = vmatprep.subr.mxu0 0.0
        %1016 = vmatpush1.msra.mxu0 0.0
        %1017 = vmatprep.subr.mxu0 0.0
        %1018 = vmatpush1.msra.mxu0 0.0
        %1019 = vmatprep.subr.mxu0 0.0
        %1020 = vmatpush1.msra.mxu0 0.0
        %1021 = vmatprep.subr.mxu0 0.0
        %1022 = vmatpush1.msra.mxu0 0.0
        %1023 = vmatprep.subr.mxu0 0.0
        %1024 = vmatpush1.msra.mxu0 0.0
        %1025 = vmatprep.subr.mxu0 0.0
        %1026 = vmatpush1.msra.mxu0 %v990
        %1027 = vmatprep.subr.mxu0 0.0
        %1028 = vmatpush2.msra.mxu0 0.0
        %1029 = vmatprep.subr.mxu0 0.0
        %1030 = vmatpush2.msra.mxu0 0.0
        %1031 = vmatprep.subr.mxu0 0.0
        %1032 = vmatpush2.msra.mxu0 0.0
        %1033 = vmatprep.subr.mxu0 0.0
        %1034 = vmatpush2.msra.mxu0 0.0
        %1035 = vmatprep.subr.mxu0 0.0
        %1036 = vmatpush2.msra.mxu0 0.0
        %1037 = vmatprep.subr.mxu0 0.0
        %1038 = vmatpush2.msra.mxu0 0.0
        %1039 = vmatprep.subr.mxu0 0.0
        %1040 = vmatpush2.msra.mxu0 0.0
        %1041 = vmatprep.subr.mxu0 0.0
        %1042 = vmatpush2.msra.mxu0 0.0
        %1043 = vmatprep.subr.mxu0 0.0
        %1044 = vmatpush2.msra.mxu0 0.0
        %1045 = vmatprep.subr.mxu0 0.0
        %1046 = vmatpush2.msra.mxu0 0.0
        %1047 = vmatprep.subr.mxu0 0.0
        %1048 = vmatpush2.msra.mxu0 0.0
        %1049 = vmatprep.subr.mxu0 0.0
        %1050 = vmatpush2.msra.mxu0 0.0
        %1051 = vmatprep.subr.mxu0 0.0
        %1052 = vmatpush2.msra.mxu0 0.0
        %1053 = vmatprep.subr.mxu0 0.0
        %1054 = vmatpush2.msra.mxu0 0.0
        %1055 = vmatprep.subr.mxu0 0.0
        %1056 = vmatpush2.msra.mxu0 0.0
        %1057 = vmatprep.subr.mxu0 0.0
        %1058 = vmatpush2.msra.mxu0 0.0
        %1059 = vmatprep.mubr.f32.mxu0 0.0
        %1060 = vmatmul.mubr.f32.gmra.mxu0 %v993
        %v1061 = vpop.f32.mrf.mxu0
        %v1062 = vadd.f32 0.0, %v1061
        %v1063 = vpop.f32.mrf.mxu0
        %1064 = vdwg.mxu0
        %1066 = vrot.lane.b32.xlu0 %v732, 8
        %v1067 = vpop.permute.xlu0 %1066
        %1070 = vrot.lane.b32.xlu0 %v897, 16
        %v1071 = vpop.permute.xlu0 %1070
        %1074 = vrot.lane.b32.xlu0 %v1062, 24
        %v1075 = vpop.permute.xlu0 %1074
        %v1077 = vsel %vm406, %v567, %v1067
        %vm1078 = vcmask 130048
        %v1079 = vsel %vm1078, %v1077, %v1071
        %vm1080 = vcmask 195584
        %v1081 = vsel %vm1080, %v1079, %v1075
        %1082 = vst.msk [vmem:[%s280] sm:$0xff] %vm309, %v1081
        %s1083 = sand.u32 %s142, 1
        %s1084 = scalar_lea.sflag [#allocation4], %s1083
        %s1085 = sand.u32 %s142, 1
        %s1086 = smul.addr %s1085, 8
        %s1087 = scalar_lea.vmem [#allocation8], %s1086
        // Predicated region
        $region49: #{tpu_custom_call.1} parent=35 // pred_check
          %p1088 = pneg %p152
        $region50: #{tpu_custom_call.1} parent=35 // pred_check_branch
          %1090 = sbr.rel (%p1088) target = $region52
        $region51: #{tpu_custom_call.1} parent=35 // pred_region
          %s1092 = ssub.s32 128, 128
          %1093 = vsyncadd %s1084, %s1092
          %s1094 = sadd.s32 %s29, %s28
          %s1095 = smul.addr %s1094, 128
          %s1096 = scalar_lea.hbm %s4, %s1095
          %s1098 = sshll.u32 %s1087, 4
          %s1099 = int_to_ptr.vmem [resolvable:$true] %s1098
          %1101 = dma.vmem_to_hbm [thread:$0]  %s1099, 128, %s1096, %s1084
        $region52: #{tpu_custom_call.1} parent=35 // pred_fallthru
          _
      $region36: #{tpu_custom_call.1} parent=5 // pred_fallthru
        _
      %p1102 = scmp.le.s32.totalorder 2, %s19
      // Predicated region
      $region53: #{tpu_custom_call.1} parent=5 // pred_check
        %p1103 = pneg %p1102
      $region54: #{tpu_custom_call.1} parent=5 // pred_check_branch
        %1105 = sbr.rel (%p1103) target = $region56
      $region55: #{tpu_custom_call.1} parent=5 // pred_region
        %s1106 = ssub.s32 %s19, 2
        // Predicated region
        $region57: #{tpu_custom_call.1} parent=55 // pred_check
          %p1107 = pneg %p158
        $region58: #{tpu_custom_call.1} parent=55 // pred_check_branch
          %1109 = sbr.rel (%p1107) target = $region60
        $region59: #{tpu_custom_call.1} parent=55 // pred_region
          %s1110 = sand.u32 %s143, 1
          %s1111 = scalar_lea.sflag [#allocation4], %s1110
          %s1112 = sand.u32 %s143, 1
          %s1113 = smul.addr %s1112, 8
          %s1114 = scalar_lea.vmem [#allocation8], %s1113
          %1115 = dma.done %s1111, 128
        $region60: #{tpu_custom_call.1} parent=55 // pred_fallthru
          _
      $region56: #{tpu_custom_call.1} parent=5 // pred_fallthru
        _
    $region6: #{tpu_custom_call.1} parent=1 // loop_footer
      %s23 = sadd.s32 1, %s19
    $region7: #{tpu_custom_call.1} parent=1 // loop_footer_branch
      %18 = sbr.rel target = $region3
    $region8: #{tpu_custom_call.1} parent=1 // loop_exit
      _
    %1116 = vsyncpa [#allocation3], 1
    %s1117 = scalar_lea.sflag [#allocation3], 1
    %1118 = vsyncpa %s1117, 1
    %1119 = vsyncpa [#allocation6], 1
    %s1120 = scalar_lea.sflag [#allocation6], 1
    %1121 = vsyncpa %s1120, 1
    %1122 = vsyncpa [#allocation4], 1
    %s1123 = scalar_lea.sflag [#allocation4], 1
    %1124 = vsyncpa %s1123, 1

</llo_original>
